<compile_context>
chip_gen: v5e
topology: v5e:2x2
jax: 0.10.0
libtpu: 0.0.40
codegen_flags: <defaults>
</compile_context>

<pallas_src>
import jax
import jax.numpy as jnp
from jax.experimental import pallas as pl
from jax.experimental.pallas import tpu as pltpu

# true (PyTorch) dims; hidden/out dims lane-padded inside the weights only
D_IN, H1, H2, H3, D_OUT = 64, 1000, 500, 250, 2
H1_P, H2_P, H3_P, D_OUT_P = 1024, 512, 256, 128


def _round_up(n, m):
    return (n + m - 1) // m * m


def tsne_mlp_kernel(x_ref,
                    w1_ref, b1_ref,
                    w2_ref, b2_ref,
                    w3_ref, b3_ref,
                    w4_ref, b4_ref,
                    o_ref):
    # (TM, 64) f32 -> bf16 once (cast hidden under the MXU work)
    x = x_ref[...].astype(jnp.bfloat16)

    # fc1 + ReLU : (TM,64) @ (64,1024) -> f32 acc, f32 bias/ReLU
    h = jnp.dot(x, w1_ref[...], preferred_element_type=jnp.float32) + b1_ref[...]
    h = jnp.maximum(h, 0.0)

    # fc2 + ReLU : (TM,1024) @ (1024,512)
    h = jnp.dot(h.astype(jnp.bfloat16), w2_ref[...],
                preferred_element_type=jnp.float32) + b2_ref[...]
    h = jnp.maximum(h, 0.0)

    # fc3 + ReLU : (TM,512) @ (512,256)
    h = jnp.dot(h.astype(jnp.bfloat16), w3_ref[...],
                preferred_element_type=jnp.float32) + b3_ref[...]
    h = jnp.maximum(h, 0.0)

    # output (no activation) : (TM,256) @ (256,128); only first 2 lanes real
    out = jnp.dot(h.astype(jnp.bfloat16), w4_ref[...],
                  preferred_element_type=jnp.float32) + b4_ref[...]

    # store only the 2 real output columns (o_ref is (TM, 2))
    o_ref[...] = out[:, :D_OUT].astype(o_ref.dtype)


def tsne_net_forward(x, params, *, tm=512):
    """x: [B, 64] float32 (or bf16). params: bf16 weights + f32 biases."""
    B = x.shape[0]

    # sublane-aligned batch tile
    TM = min(tm, _round_up(B, 8))
    # guarantee >= 2 grid steps when possible so the "parallel" batch axis can
    # shard across the 2 TensorCores on v7x
    if B > 8 and pl.cdiv(B, TM) < 2:
        TM = _round_up(pl.cdiv(B, 2), 8)
    grid = (pl.cdiv(B, TM),)   # ragged last block allowed; OOB writes dropped

    weight_args = (params["w1"], params["b1"],
                   params["w2"], params["b2"],
                   params["w3"], params["b3"],
                   params["w4"], params["b4"])

    # weights/biases: full-array blocks, constant block index every grid step
    # -> loaded into VMEM once and resident across the batch grid.
    w_specs = [pl.BlockSpec(a.shape, lambda i: (0, 0)) for a in weight_args]
    in_specs = [pl.BlockSpec((TM, D_IN), lambda i: (i, 0))] + w_specs
    out_specs = pl.BlockSpec((TM, D_OUT), lambda i: (i, 0))

    return pl.pallas_call(
        tsne_mlp_kernel,
        out_shape=jax.ShapeDtypeStruct((B, D_OUT), jnp.float32),
        grid=grid,
        in_specs=in_specs,
        out_specs=out_specs,
        compiler_params=pltpu.CompilerParams(
            dimension_semantics=("parallel",),
            vmem_limit_bytes=32 * 1024 * 1024),
    )(x, *weight_args)


def init_params(key):
    """nn.Linear-style init (uniform +/-1/sqrt(fan_in)), hidden/out dims
    zero-padded to lane multiples. Weights [in_pad, out_pad] bf16, biases
    [1, out_pad] f32.  (Zero-padded units contribute exactly nothing.)"""
    dims = [(D_IN, H1), (H1, H2), (H2, H3), (H3, D_OUT)]
    pads = [(D_IN, H1_P), (H1_P, H2_P), (H2_P, H3_P), (H3_P, D_OUT_P)]
    params = {}
    for i, ((fi, fo), (fip, fop)) in enumerate(zip(dims, pads), start=1):
        key, kw, kb = jax.random.split(key, 3)
        bound = 1.0 / jnp.sqrt(jnp.float32(fi))
        w = jax.random.uniform(kw, (fi, fo), jnp.float32, minval=-bound, maxval=bound)
        b = jax.random.uniform(kb, (fo,), jnp.float32, minval=-bound, maxval=bound)
        params[f"w{i}"] = (jnp.zeros((fip, fop), jnp.float32)
                           .at[:fi, :fo].set(w).astype(jnp.bfloat16))
        params[f"b{i}"] = jnp.zeros((1, fop), jnp.float32).at[0, :fo].set(b)
    return params


def reference_forward(x, params):
    """Pure-JAX reference mirroring the kernel numerics (bf16 matmul inputs,
    f32 accumulation, f32 bias/ReLU)."""
    h = x.astype(jnp.float32)
    for i in range(1, 5):
        h = jnp.dot(h.astype(jnp.bfloat16), params[f"w{i}"],
                    preferred_element_type=jnp.float32) + params[f"b{i}"]
        if i < 4:
            h = jnp.maximum(h, 0.0)
    return h[:, :D_OUT]


if __name__ == "__main__":
    key = jax.random.PRNGKey(0)
    key, kx1, kx2, kx3 = jax.random.split(key, 4)
    params = init_params(key)

    # small batch (single-block path)
    x_small = jax.random.normal(kx1, (8, D_IN), dtype=jnp.float32)
    out_small = jax.block_until_ready(tsne_net_forward(x_small, params))
    ref_small = reference_forward(x_small, params)
    assert out_small.shape == (8, D_OUT)
    assert jnp.allclose(out_small, ref_small, atol=1e-3, rtol=1e-3), \
        "mismatch vs reference (small batch)"

    # non-multiple batch (exercises 2-step grid + ragged last block)
    x_mid = jax.random.normal(kx2, (300, D_IN), dtype=jnp.float32)
    out_mid = jax.block_until_ready(tsne_net_forward(x_mid, params))
    ref_mid = reference_forward(x_mid, params)
    assert out_mid.shape == (300, D_OUT)
    assert jnp.allclose(out_mid, ref_mid, atol=1e-3, rtol=1e-3), \
        "mismatch vs reference (ragged batch)"

    # larger batch (exercises default TM=512 tiling with a ragged tail)
    x_big = jax.random.normal(kx3, (1100, D_IN), dtype=jnp.float32)
    out_big = jax.block_until_ready(tsne_net_forward(x_big, params))
    ref_big = reference_forward(x_big, params)
    assert out_big.shape == (1100, D_OUT)
    assert jnp.allclose(out_big, ref_big, atol=1e-3, rtol=1e-3), \
        "mismatch vs reference (tiled batch)"

    print("KERNEL_OK")
</pallas_src>

<mosaic_0001>
module attributes {stable_mosaic.version = 11 : i64} {
  func.func @tsne_mlp_kernel(%arg0: i32, %arg1: memref<8x64xf32, #tpu.memory_space<vmem>>, %arg2: memref<64x1024xbf16, #tpu.memory_space<vmem>>, %arg3: memref<1x1024xf32, #tpu.memory_space<vmem>>, %arg4: memref<1024x512xbf16, #tpu.memory_space<vmem>>, %arg5: memref<1x512xf32, #tpu.memory_space<vmem>>, %arg6: memref<512x256xbf16, #tpu.memory_space<vmem>>, %arg7: memref<1x256xf32, #tpu.memory_space<vmem>>, %arg8: memref<256x128xbf16, #tpu.memory_space<vmem>>, %arg9: memref<1x128xf32, #tpu.memory_space<vmem>>, %arg10: memref<8x2xf32, #tpu.memory_space<vmem>>) attributes {dimension_semantics = [#tpu.dimension_semantics<parallel>], iteration_bounds = array<i64: 1>, scalar_prefetch = 0 : i64, scratch_operands = 0 : i64, tpu.core_type = #tpu.core_type<tc>, window_params = [{transform_indices = @transform_0, window_bounds = array<i64: 8, 64>}, {pipeline_mode = #tpu.pipeline_mode<synchronous>, transform_indices = @transform_1, window_bounds = array<i64: 64, 1024>}, {pipeline_mode = #tpu.pipeline_mode<synchronous>, transform_indices = @transform_2, window_bounds = array<i64: 1, 1024>}, {pipeline_mode = #tpu.pipeline_mode<synchronous>, transform_indices = @transform_3, window_bounds = array<i64: 1024, 512>}, {pipeline_mode = #tpu.pipeline_mode<synchronous>, transform_indices = @transform_4, window_bounds = array<i64: 1, 512>}, {pipeline_mode = #tpu.pipeline_mode<synchronous>, transform_indices = @transform_5, window_bounds = array<i64: 512, 256>}, {pipeline_mode = #tpu.pipeline_mode<synchronous>, transform_indices = @transform_6, window_bounds = array<i64: 1, 256>}, {pipeline_mode = #tpu.pipeline_mode<synchronous>, transform_indices = @transform_7, window_bounds = array<i64: 256, 128>}, {pipeline_mode = #tpu.pipeline_mode<synchronous>, transform_indices = @transform_8, window_bounds = array<i64: 1, 128>}, {transform_indices = @transform_9, window_bounds = array<i64: 8, 2>}]} {
    %c0 = arith.constant 0 : index
    %c0_0 = arith.constant 0 : index
    %0 = vector.load %arg1[%c0, %c0_0] : memref<8x64xf32, #tpu.memory_space<vmem>>, vector<8x64xf32>
    %1 = arith.truncf %0 : vector<8x64xf32> to vector<8x64xbf16>
    %c0_1 = arith.constant 0 : index
    %c0_2 = arith.constant 0 : index
    %2 = vector.load %arg2[%c0_1, %c0_2] : memref<64x1024xbf16, #tpu.memory_space<vmem>>, vector<64x1024xbf16>
    %cst = arith.constant dense<0.000000e+00> : vector<8x1024xf32>
    %3 = tpu.matmul %1, %2, %cst {dimension_numbers = #tpu.dot_dimension_numbers<[1], [0], [0], [1], [0, 0, 1, 1], [], []>} : vector<8x64xbf16>, vector<64x1024xbf16>, vector<8x1024xf32> -> vector<8x1024xf32>
    %c0_3 = arith.constant 0 : index
    %c0_4 = arith.constant 0 : index
    %4 = vector.load %arg3[%c0_3, %c0_4] : memref<1x1024xf32, #tpu.memory_space<vmem>>, vector<1x1024xf32>
    %5 = vector.broadcast %4 : vector<1x1024xf32> to vector<8x1024xf32>
    %6 = arith.addf %3, %5 : vector<8x1024xf32>
    %cst_5 = arith.constant 0.000000e+00 : f32
    %7 = vector.broadcast %cst_5 : f32 to vector<8x1024xf32>
    %8 = arith.maximumf %6, %7 : vector<8x1024xf32>
    %9 = arith.truncf %8 : vector<8x1024xf32> to vector<8x1024xbf16>
    %c0_6 = arith.constant 0 : index
    %c0_7 = arith.constant 0 : index
    %10 = vector.load %arg4[%c0_6, %c0_7] : memref<1024x512xbf16, #tpu.memory_space<vmem>>, vector<1024x512xbf16>
    %cst_8 = arith.constant dense<0.000000e+00> : vector<8x512xf32>
    %11 = tpu.matmul %9, %10, %cst_8 {dimension_numbers = #tpu.dot_dimension_numbers<[1], [0], [0], [1], [0, 0, 1, 1], [], []>} : vector<8x1024xbf16>, vector<1024x512xbf16>, vector<8x512xf32> -> vector<8x512xf32>
    %c0_9 = arith.constant 0 : index
    %c0_10 = arith.constant 0 : index
    %12 = vector.load %arg5[%c0_9, %c0_10] : memref<1x512xf32, #tpu.memory_space<vmem>>, vector<1x512xf32>
    %13 = vector.broadcast %12 : vector<1x512xf32> to vector<8x512xf32>
    %14 = arith.addf %11, %13 : vector<8x512xf32>
    %cst_11 = arith.constant 0.000000e+00 : f32
    %15 = vector.broadcast %cst_11 : f32 to vector<8x512xf32>
    %16 = arith.maximumf %14, %15 : vector<8x512xf32>
    %17 = arith.truncf %16 : vector<8x512xf32> to vector<8x512xbf16>
    %c0_12 = arith.constant 0 : index
    %c0_13 = arith.constant 0 : index
    %18 = vector.load %arg6[%c0_12, %c0_13] : memref<512x256xbf16, #tpu.memory_space<vmem>>, vector<512x256xbf16>
    %cst_14 = arith.constant dense<0.000000e+00> : vector<8x256xf32>
    %19 = tpu.matmul %17, %18, %cst_14 {dimension_numbers = #tpu.dot_dimension_numbers<[1], [0], [0], [1], [0, 0, 1, 1], [], []>} : vector<8x512xbf16>, vector<512x256xbf16>, vector<8x256xf32> -> vector<8x256xf32>
    %c0_15 = arith.constant 0 : index
    %c0_16 = arith.constant 0 : index
    %20 = vector.load %arg7[%c0_15, %c0_16] : memref<1x256xf32, #tpu.memory_space<vmem>>, vector<1x256xf32>
    %21 = vector.broadcast %20 : vector<1x256xf32> to vector<8x256xf32>
    %22 = arith.addf %19, %21 : vector<8x256xf32>
    %cst_17 = arith.constant 0.000000e+00 : f32
    %23 = vector.broadcast %cst_17 : f32 to vector<8x256xf32>
    %24 = arith.maximumf %22, %23 : vector<8x256xf32>
    %25 = arith.truncf %24 : vector<8x256xf32> to vector<8x256xbf16>
    %c0_18 = arith.constant 0 : index
    %c0_19 = arith.constant 0 : index
    %26 = vector.load %arg8[%c0_18, %c0_19] : memref<256x128xbf16, #tpu.memory_space<vmem>>, vector<256x128xbf16>
    %cst_20 = arith.constant dense<0.000000e+00> : vector<8x128xf32>
    %27 = tpu.matmul %25, %26, %cst_20 {dimension_numbers = #tpu.dot_dimension_numbers<[1], [0], [0], [1], [0, 0, 1, 1], [], []>} : vector<8x256xbf16>, vector<256x128xbf16>, vector<8x128xf32> -> vector<8x128xf32>
    %c0_21 = arith.constant 0 : index
    %c0_22 = arith.constant 0 : index
    %28 = vector.load %arg9[%c0_21, %c0_22] : memref<1x128xf32, #tpu.memory_space<vmem>>, vector<1x128xf32>
    %29 = vector.broadcast %28 : vector<1x128xf32> to vector<8x128xf32>
    %30 = arith.addf %27, %29 : vector<8x128xf32>
    %31 = vector.extract_strided_slice %30 {offsets = [0, 0], sizes = [8, 2], strides = [1, 1]} : vector<8x128xf32> to vector<8x2xf32>
    %c0_23 = arith.constant 0 : index
    %c0_24 = arith.constant 0 : index
    %32 = vector.load %arg10[%c0_23, %c0_24] : memref<8x2xf32, #tpu.memory_space<vmem>>, vector<8x2xf32>
    tpu.vector_store %arg10[%c0_23, %c0_24], %31 {strides = array<i32>} : memref<8x2xf32, #tpu.memory_space<vmem>>, vector<8x2xf32>,
    return
  }
  func.func @transform_0(%arg0: i32) -> (i32, i32) {
    %c0_i32 = arith.constant 0 : i32
    %c0_i32_0 = arith.constant 0 : i32
    return %arg0, %c0_i32 : i32, i32
  }
  func.func @transform_1(%arg0: i32) -> (i32, i32) {
    %c0_i32 = arith.constant 0 : i32
    %c0_i32_0 = arith.constant 0 : i32
    %c0_i32_1 = arith.constant 0 : i32
    return %c0_i32, %c0_i32_0 : i32, i32
  }
  func.func @transform_2(%arg0: i32) -> (i32, i32) {
    %c0_i32 = arith.constant 0 : i32
    %c0_i32_0 = arith.constant 0 : i32
    %c0_i32_1 = arith.constant 0 : i32
    return %c0_i32, %c0_i32_0 : i32, i32
  }
  func.func @transform_3(%arg0: i32) -> (i32, i32) {
    %c0_i32 = arith.constant 0 : i32
    %c0_i32_0 = arith.constant 0 : i32
    %c0_i32_1 = arith.constant 0 : i32
    return %c0_i32, %c0_i32_0 : i32, i32
  }
  func.func @transform_4(%arg0: i32) -> (i32, i32) {
    %c0_i32 = arith.constant 0 : i32
    %c0_i32_0 = arith.constant 0 : i32
    %c0_i32_1 = arith.constant 0 : i32
    return %c0_i32, %c0_i32_0 : i32, i32
  }
  func.func @transform_5(%arg0: i32) -> (i32, i32) {
    %c0_i32 = arith.constant 0 : i32
    %c0_i32_0 = arith.constant 0 : i32
    %c0_i32_1 = arith.constant 0 : i32
    return %c0_i32, %c0_i32_0 : i32, i32
  }
  func.func @transform_6(%arg0: i32) -> (i32, i32) {
    %c0_i32 = arith.constant 0 : i32
    %c0_i32_0 = arith.constant 0 : i32
    %c0_i32_1 = arith.constant 0 : i32
    return %c0_i32, %c0_i32_0 : i32, i32
  }
  func.func @transform_7(%arg0: i32) -> (i32, i32) {
    %c0_i32 = arith.constant 0 : i32
    %c0_i32_0 = arith.constant 0 : i32
    %c0_i32_1 = arith.constant 0 : i32
    return %c0_i32, %c0_i32_0 : i32, i32
  }
  func.func @transform_8(%arg0: i32) -> (i32, i32) {
    %c0_i32 = arith.constant 0 : i32
    %c0_i32_0 = arith.constant 0 : i32
    %c0_i32_1 = arith.constant 0 : i32
    return %c0_i32, %c0_i32_0 : i32, i32
  }
  func.func @transform_9(%arg0: i32) -> (i32, i32) {
    %c0_i32 = arith.constant 0 : i32
    %c0_i32_0 = arith.constant 0 : i32
    return %arg0, %c0_i32 : i32, i32
  }
}

</mosaic_0001>

<llo_original>
// kernel: tpu_custom_call.1
$region0: #{tpu_custom_call.1}
  #allocation0 [shape = 'u32[]', space=smem, size = 0x4, offset = 0x4, fixed_abs, tag = 'smem constant byte address 0x4 - core index']
  #allocation1 [shape = 'u32[72,128]{1,0:T(1,128)}', space=vmem, size = 0x9000, scoped, tag = 'internal scratch']
  %s0 = inlined_call_operand.hbm [shape: f32[8,64], index: 0, kind: input, shape index: {}]
  %s1 = inlined_call_operand.hbm [shape: bf16[64,1024], index: 1, kind: input, shape index: {}]
  %s2 = inlined_call_operand.hbm [shape: f32[1,1024], index: 2, kind: input, shape index: {}]
  %s3 = inlined_call_operand.hbm [shape: bf16[1024,512], index: 3, kind: input, shape index: {}]
  %s4 = inlined_call_operand.hbm [shape: f32[1,512], index: 4, kind: input, shape index: {}]
  %s5 = inlined_call_operand.hbm [shape: bf16[512,256], index: 5, kind: input, shape index: {}]
  %s6 = inlined_call_operand.vmem [shape: f32[1,256], index: 6, kind: input, shape index: {}]
  %s7 = inlined_call_operand.hbm [shape: bf16[256,128], index: 7, kind: input, shape index: {}]
  %s8 = inlined_call_operand.vmem [shape: f32[1,128], index: 8, kind: input, shape index: {}]
  %s9 = inlined_call_operand.vmem [shape: f32[8,2], index: 9, kind: output, shape index: {}]
  %s10 = sld [smem:[#allocation0]]
  $region74: #{tpu_custom_call.1} parent=0
    _
  %s12 = ssub.s32 1, %s10
  %s13 = scalar_select 0, %s12, %s10
  $region1: #{tpu_custom_call.1} parent=0
    #allocation2 [shape = 'u8[4096]{0}', space=vmem, size = 0x1000, scoped, tag = 'input window, operand 0, single buffered']
    #allocation3 [shape = 's32[1]{0}', space=sflag, size = 0x4, scoped, tag = 'scoped memory for tpu_custom_call.1']
    #allocation4 [shape = 'u8[131072]{0}', space=vmem, size = 0x20000, scoped, tag = 'input window, operand 1, single buffered']
    #allocation5 [shape = 's32[1]{0}', space=sflag, size = 0x4, scoped, tag = 'scoped memory for tpu_custom_call.1']
    #allocation6 [shape = 'u8[4096]{0}', space=vmem, size = 0x1000, scoped, tag = 'input window, operand 2, single buffered']
    #allocation7 [shape = 'u8[1048576]{0}', space=vmem, size = 0x100000, scoped, tag = 'input window, operand 3, single buffered']
    #allocation8 [shape = 's32[1]{0}', space=sflag, size = 0x4, scoped, tag = 'scoped memory for tpu_custom_call.1']
    #allocation9 [shape = 'u8[2048]{0}', space=vmem, size = 0x800, scoped, tag = 'input window, operand 4, single buffered']
    #allocation10 [shape = 'u8[262144]{0}', space=vmem, size = 0x40000, scoped, tag = 'input window, operand 5, single buffered']
    #allocation11 [shape = 's32[1]{0}', space=sflag, size = 0x4, scoped, tag = 'scoped memory for tpu_custom_call.1']
    #allocation12 [shape = 'u8[65536]{0}', space=vmem, size = 0x10000, scoped, tag = 'input window, operand 7, single buffered']
    %14 = vsyncpa [#allocation3], 0
    %15 = vsyncpa [#allocation5], 0
    %16 = vsyncpa [#allocation8], 0
    %17 = vsyncpa [#allocation11], 0
    // Predicated region
    $region2: #{tpu_custom_call.1} parent=1 // pred_check
      _
    $region3: #{tpu_custom_call.1} parent=1 // pred_check_branch
      %19 = sbr.rel (0) target = $region5
    $region4: #{tpu_custom_call.1} parent=1 // pred_region
      %21 = vsyncadd [#allocation3], 0
      %s23 = sshll.u32 %s0, 4
      %s24 = int_to_ptr.hbm [resolvable:$true] %s23
      %s25 = sshll.u32 [#allocation2], 4
      %s26 = int_to_ptr.vmem [resolvable:$true] %s25
      %28 = dma.hbm_to_vmem [thread:$0]  %s24, 128, %s26, [#allocation3]
    $region5: #{tpu_custom_call.1} parent=1 // pred_fallthru
      _
    // Predicated region
    $region6: #{tpu_custom_call.1} parent=1 // pred_check
      _
    $region7: #{tpu_custom_call.1} parent=1 // pred_check_branch
      %30 = sbr.rel (0) target = $region9
    $region8: #{tpu_custom_call.1} parent=1 // pred_region
      %32 = vsyncadd [#allocation5], 0
      %s33 = sshll.u32 %s1, 4
      %s34 = int_to_ptr.hbm [resolvable:$true] %s33
      %s35 = sshll.u32 [#allocation4], 4
      %s36 = int_to_ptr.vmem [resolvable:$true] %s35
      %41 = dma.hbm_to_vmem [thread:$0]  %s34, 4096, %s36, [#allocation5], 512, 512, 32
    $region9: #{tpu_custom_call.1} parent=1 // pred_fallthru
      _
    // Predicated region
    $region10: #{tpu_custom_call.1} parent=1 // pred_check
      _
    $region11: #{tpu_custom_call.1} parent=1 // pred_check_branch
      %43 = sbr.rel (0) target = $region13
    $region12: #{tpu_custom_call.1} parent=1 // pred_region
      %45 = vsyncadd [#allocation5], 0
      %s47 = sshll.u32 %s2, 4
      %s48 = int_to_ptr.hbm [resolvable:$true] %s47
      %s49 = sshll.u32 [#allocation6], 4
      %s50 = int_to_ptr.vmem [resolvable:$true] %s49
      %52 = dma.hbm_to_vmem [thread:$0]  %s48, 128, %s50, [#allocation5]
    $region13: #{tpu_custom_call.1} parent=1 // pred_fallthru
      _
    // Predicated region
    $region14: #{tpu_custom_call.1} parent=1 // pred_check
      _
    $region15: #{tpu_custom_call.1} parent=1 // pred_check_branch
      %54 = sbr.rel (0) target = $region17
    $region16: #{tpu_custom_call.1} parent=1 // pred_region
      %56 = vsyncadd [#allocation8], 0
      %s57 = sshll.u32 %s3, 4
      %s58 = int_to_ptr.hbm [resolvable:$true] %s57
      %s59 = sshll.u32 [#allocation7], 4
      %s60 = int_to_ptr.vmem [resolvable:$true] %s59
      %65 = dma.hbm_to_vmem [thread:$0]  %s58, 32768, %s60, [#allocation8], 256, 256, 16
    $region17: #{tpu_custom_call.1} parent=1 // pred_fallthru
      _
    // Predicated region
    $region18: #{tpu_custom_call.1} parent=1 // pred_check
      _
    $region19: #{tpu_custom_call.1} parent=1 // pred_check_branch
      %67 = sbr.rel (0) target = $region21
    $region20: #{tpu_custom_call.1} parent=1 // pred_region
      %69 = vsyncadd [#allocation8], 0
      %s71 = sshll.u32 %s4, 4
      %s72 = int_to_ptr.hbm [resolvable:$true] %s71
      %s73 = sshll.u32 [#allocation9], 4
      %s74 = int_to_ptr.vmem [resolvable:$true] %s73
      %76 = dma.hbm_to_vmem [thread:$0]  %s72, 64, %s74, [#allocation8]
    $region21: #{tpu_custom_call.1} parent=1 // pred_fallthru
      _
    // Predicated region
    $region22: #{tpu_custom_call.1} parent=1 // pred_check
      _
    $region23: #{tpu_custom_call.1} parent=1 // pred_check_branch
      %78 = sbr.rel (0) target = $region25
    $region24: #{tpu_custom_call.1} parent=1 // pred_region
      %80 = vsyncadd [#allocation11], 0
      %s81 = sshll.u32 %s5, 4
      %s82 = int_to_ptr.hbm [resolvable:$true] %s81
      %s83 = sshll.u32 [#allocation10], 4
      %s84 = int_to_ptr.vmem [resolvable:$true] %s83
      %89 = dma.hbm_to_vmem [thread:$0]  %s82, 8192, %s84, [#allocation11], 128, 128, 8
    $region25: #{tpu_custom_call.1} parent=1 // pred_fallthru
      _
    // Predicated region
    $region26: #{tpu_custom_call.1} parent=1 // pred_check
      _
    $region27: #{tpu_custom_call.1} parent=1 // pred_check_branch
      %91 = sbr.rel (0) target = $region29
    $region28: #{tpu_custom_call.1} parent=1 // pred_region
      _
    $region29: #{tpu_custom_call.1} parent=1 // pred_fallthru
      _
    // Predicated region
    $region30: #{tpu_custom_call.1} parent=1 // pred_check
      _
    $region31: #{tpu_custom_call.1} parent=1 // pred_check_branch
      %93 = sbr.rel (0) target = $region33
    $region32: #{tpu_custom_call.1} parent=1 // pred_region
      %95 = vsyncadd [#allocation11], 0
      %s96 = sshll.u32 %s7, 4
      %s97 = int_to_ptr.hbm [resolvable:$true] %s96
      %s98 = sshll.u32 [#allocation12], 4
      %s99 = int_to_ptr.vmem [resolvable:$true] %s98
      %104 = dma.hbm_to_vmem [thread:$0]  %s97, 2048, %s99, [#allocation11], 64, 64, 4
    $region33: #{tpu_custom_call.1} parent=1 // pred_fallthru
      _
    // Predicated region
    $region34: #{tpu_custom_call.1} parent=1 // pred_check
      _
    $region35: #{tpu_custom_call.1} parent=1 // pred_check_branch
      %106 = sbr.rel (0) target = $region37
    $region36: #{tpu_custom_call.1} parent=1 // pred_region
      _
    $region37: #{tpu_custom_call.1} parent=1 // pred_fallthru
      _
    // Predicated region
    $region38: #{tpu_custom_call.1} parent=1 // pred_check
      _
    $region39: #{tpu_custom_call.1} parent=1 // pred_check_branch
      %108 = sbr.rel (0) target = $region41
    $region40: #{tpu_custom_call.1} parent=1 // pred_region
      %110 = dma.done [#allocation3], 128
    $region41: #{tpu_custom_call.1} parent=1 // pred_fallthru
      _
    // Predicated region
    $region42: #{tpu_custom_call.1} parent=1 // pred_check
      _
    $region43: #{tpu_custom_call.1} parent=1 // pred_check_branch
      %112 = sbr.rel (0) target = $region45
    $region44: #{tpu_custom_call.1} parent=1 // pred_region
      %114 = dma.done [#allocation5], 4096
    $region45: #{tpu_custom_call.1} parent=1 // pred_fallthru
      _
    // Predicated region
    $region46: #{tpu_custom_call.1} parent=1 // pred_check
      _
    $region47: #{tpu_custom_call.1} parent=1 // pred_check_branch
      %116 = sbr.rel (0) target = $region49
    $region48: #{tpu_custom_call.1} parent=1 // pred_region
      %118 = dma.done [#allocation5], 128
    $region49: #{tpu_custom_call.1} parent=1 // pred_fallthru
      _
    // Predicated region
    $region50: #{tpu_custom_call.1} parent=1 // pred_check
      _
    $region51: #{tpu_custom_call.1} parent=1 // pred_check_branch
      %120 = sbr.rel (0) target = $region53
    $region52: #{tpu_custom_call.1} parent=1 // pred_region
      %122 = dma.done [#allocation8], 32768
    $region53: #{tpu_custom_call.1} parent=1 // pred_fallthru
      _
    // Predicated region
    $region54: #{tpu_custom_call.1} parent=1 // pred_check
      _
    $region55: #{tpu_custom_call.1} parent=1 // pred_check_branch
      %124 = sbr.rel (0) target = $region57
    $region56: #{tpu_custom_call.1} parent=1 // pred_region
      %126 = dma.done [#allocation8], 64
    $region57: #{tpu_custom_call.1} parent=1 // pred_fallthru
      _
    // Predicated region
    $region58: #{tpu_custom_call.1} parent=1 // pred_check
      _
    $region59: #{tpu_custom_call.1} parent=1 // pred_check_branch
      %128 = sbr.rel (0) target = $region61
    $region60: #{tpu_custom_call.1} parent=1 // pred_region
      %130 = dma.done [#allocation11], 8192
    $region61: #{tpu_custom_call.1} parent=1 // pred_fallthru
      _
    // Predicated region
    $region62: #{tpu_custom_call.1} parent=1 // pred_check
      _
    $region63: #{tpu_custom_call.1} parent=1 // pred_check_branch
      %132 = sbr.rel (0) target = $region65
    $region64: #{tpu_custom_call.1} parent=1 // pred_region
      %134 = dma.done [#allocation11], 2048
    $region65: #{tpu_custom_call.1} parent=1 // pred_fallthru
      _
    %v136 = vld [vmem:[#allocation2] sm:$0xff]
    %v137 = vpack.c.bf16 %v136, %v136
    %v138 = vld [vmem:[#allocation4] sm:$0xff]
    %v139 = vld [vmem:[#allocation4 + $0x8] sm:$0xff]
    %v140 = vld [vmem:[#allocation4 + $0x10] sm:$0xff]
    %v141 = vld [vmem:[#allocation4 + $0x18] sm:$0xff]
    %v142 = vld [vmem:[#allocation4 + $0x20] sm:$0xff]
    %v143 = vld [vmem:[#allocation4 + $0x28] sm:$0xff]
    %v144 = vld [vmem:[#allocation4 + $0x30] sm:$0xff]
    %v145 = vld [vmem:[#allocation4 + $0x38] sm:$0xff]
    %v146 = vld [vmem:[#allocation4 + $0x40] sm:$0xff]
    %v147 = vld [vmem:[#allocation4 + $0x48] sm:$0xff]
    %v148 = vld [vmem:[#allocation4 + $0x50] sm:$0xff]
    %v149 = vld [vmem:[#allocation4 + $0x58] sm:$0xff]
    %v150 = vld [vmem:[#allocation4 + $0x60] sm:$0xff]
    %v151 = vld [vmem:[#allocation4 + $0x68] sm:$0xff]
    %v152 = vld [vmem:[#allocation4 + $0x70] sm:$0xff]
    %v153 = vld [vmem:[#allocation4 + $0x78] sm:$0xff]
    %v154 = vld [vmem:[#allocation4 + $0x80] sm:$0xff]
    %v155 = vld [vmem:[#allocation4 + $0x88] sm:$0xff]
    %v156 = vld [vmem:[#allocation4 + $0x90] sm:$0xff]
    %v157 = vld [vmem:[#allocation4 + $0x98] sm:$0xff]
    %v158 = vld [vmem:[#allocation4 + $0xa0] sm:$0xff]
    %v159 = vld [vmem:[#allocation4 + $0xa8] sm:$0xff]
    %v160 = vld [vmem:[#allocation4 + $0xb0] sm:$0xff]
    %v161 = vld [vmem:[#allocation4 + $0xb8] sm:$0xff]
    %v162 = vld [vmem:[#allocation4 + $0xc0] sm:$0xff]
    %v163 = vld [vmem:[#allocation4 + $0xc8] sm:$0xff]
    %v164 = vld [vmem:[#allocation4 + $0xd0] sm:$0xff]
    %v165 = vld [vmem:[#allocation4 + $0xd8] sm:$0xff]
    %v166 = vld [vmem:[#allocation4 + $0xe0] sm:$0xff]
    %v167 = vld [vmem:[#allocation4 + $0xe8] sm:$0xff]
    %v168 = vld [vmem:[#allocation4 + $0xf0] sm:$0xff]
    %v169 = vld [vmem:[#allocation4 + $0xf8] sm:$0xff]
    %v170 = vld [vmem:[#allocation6] sm:$0xff]
    %v172 = vperm.slane %v170, 0
    %v173 = vperm.slane %v170, 1
    %v174 = vperm.slane %v170, 2
    %v175 = vperm.slane %v170, 3
    %v176 = vperm.slane %v170, 4
    %v177 = vperm.slane %v170, 5
    %v178 = vperm.slane %v170, 6
    %v179 = vperm.slane %v170, 7
    %v220 = vunpack.c.l.b16 %v138
    %v221 = vunpack.c.h.b16 %v138
    %v222 = vunpack.c.l.b16 %v139
    %v223 = vunpack.c.h.b16 %v139
    %v224 = vunpack.c.l.b16 %v140
    %v225 = vunpack.c.h.b16 %v140
    %v226 = vunpack.c.l.b16 %v141
    %v227 = vunpack.c.h.b16 %v141
    %v228 = vunpack.c.l.b16 %v142
    %v229 = vunpack.c.h.b16 %v142
    %v230 = vunpack.c.l.b16 %v143
    %v231 = vunpack.c.h.b16 %v143
    %v232 = vunpack.c.l.b16 %v144
    %v233 = vunpack.c.h.b16 %v144
    %v234 = vunpack.c.l.b16 %v145
    %v235 = vunpack.c.h.b16 %v145
    %v236 = vunpack.c.l.b16 %v146
    %v237 = vunpack.c.h.b16 %v146
    %v238 = vunpack.c.l.b16 %v147
    %v239 = vunpack.c.h.b16 %v147
    %v240 = vunpack.c.l.b16 %v148
    %v241 = vunpack.c.h.b16 %v148
    %v242 = vunpack.c.l.b16 %v149
    %v243 = vunpack.c.h.b16 %v149
    %v244 = vunpack.c.l.b16 %v150
    %v245 = vunpack.c.h.b16 %v150
    %v246 = vunpack.c.l.b16 %v151
    %v247 = vunpack.c.h.b16 %v151
    %v248 = vunpack.c.l.b16 %v152
    %v249 = vunpack.c.h.b16 %v152
    %v250 = vunpack.c.l.b16 %v153
    %v251 = vunpack.c.h.b16 %v153
    %v252 = vunpack.c.l.b16 %v154
    %v253 = vunpack.c.h.b16 %v154
    %v254 = vunpack.c.l.b16 %v155
    %v255 = vunpack.c.h.b16 %v155
    %v256 = vunpack.c.l.b16 %v156
    %v257 = vunpack.c.h.b16 %v156
    %v258 = vunpack.c.l.b16 %v157
    %v259 = vunpack.c.h.b16 %v157
    %v260 = vunpack.c.l.b16 %v158
    %v261 = vunpack.c.h.b16 %v158
    %v262 = vunpack.c.l.b16 %v159
    %v263 = vunpack.c.h.b16 %v159
    %v264 = vunpack.c.l.b16 %v160
    %v265 = vunpack.c.h.b16 %v160
    %v266 = vunpack.c.l.b16 %v161
    %v267 = vunpack.c.h.b16 %v161
    %v268 = vunpack.c.l.b16 %v162
    %v269 = vunpack.c.h.b16 %v162
    %v270 = vunpack.c.l.b16 %v163
    %v271 = vunpack.c.h.b16 %v163
    %v272 = vunpack.c.l.b16 %v164
    %v273 = vunpack.c.h.b16 %v164
    %v274 = vunpack.c.l.b16 %v165
    %v275 = vunpack.c.h.b16 %v165
    %v276 = vunpack.c.l.b16 %v166
    %v277 = vunpack.c.h.b16 %v166
    %v278 = vunpack.c.l.b16 %v167
    %v279 = vunpack.c.h.b16 %v167
    %v280 = vunpack.c.l.b16 %v168
    %v281 = vunpack.c.h.b16 %v168
    %v282 = vunpack.c.l.b16 %v169
    %v283 = vunpack.c.h.b16 %v169
    %v284 = vpack.c.b16 %v228, %v220
    %v285 = vpack.c.b16 %v229, %v221
    %v286 = vpack.c.b16 %v230, %v222
    %v287 = vpack.c.b16 %v231, %v223
    %v288 = vpack.c.b16 %v232, %v224
    %v289 = vpack.c.b16 %v233, %v225
    %v290 = vpack.c.b16 %v234, %v226
    %v291 = vpack.c.b16 %v235, %v227
    %v292 = vpack.c.b16 %v244, %v236
    %v293 = vpack.c.b16 %v245, %v237
    %v294 = vpack.c.b16 %v246, %v238
    %v295 = vpack.c.b16 %v247, %v239
    %v296 = vpack.c.b16 %v248, %v240
    %v297 = vpack.c.b16 %v249, %v241
    %v298 = vpack.c.b16 %v250, %v242
    %v299 = vpack.c.b16 %v251, %v243
    %v300 = vpack.c.b16 %v260, %v252
    %v301 = vpack.c.b16 %v261, %v253
    %v302 = vpack.c.b16 %v262, %v254
    %v303 = vpack.c.b16 %v263, %v255
    %v304 = vpack.c.b16 %v264, %v256
    %v305 = vpack.c.b16 %v265, %v257
    %v306 = vpack.c.b16 %v266, %v258
    %v307 = vpack.c.b16 %v267, %v259
    %v308 = vpack.c.b16 %v276, %v268
    %v309 = vpack.c.b16 %v277, %v269
    %v310 = vpack.c.b16 %v278, %v270
    %v311 = vpack.c.b16 %v279, %v271
    %v312 = vpack.c.b16 %v280, %v272
    %v313 = vpack.c.b16 %v281, %v273
    %v314 = vpack.c.b16 %v282, %v274
    %v315 = vpack.c.b16 %v283, %v275
    %vm348 = vcmask 523264
    %v350 = vsel %vm348, %v137, 0
    %352 = vmatpush.bf16.msra.mxu0 0
    %353 = vmatpush.bf16.msra.mxu0 0
    %354 = vmatpush.bf16.msra.mxu0 0
    %355 = vmatpush.bf16.msra.mxu0 0
    %356 = vmatpush.bf16.msra.mxu0 %v308
    %357 = vmatpush.bf16.msra.mxu0 %v300
    %358 = vmatpush.bf16.msra.mxu0 %v292
    %359 = vmatpush.bf16.msra.mxu0 %v284
    %360 = vmatmul.bf16.gmra.mxu0 %v350
    %v361 = vpop.f32.mrf.mxu0
    %v362 = vadd.f32 %v172, %v361
    %v363 = vpop.f32.mrf.mxu0
    %364 = vdwg.mxu0
    %365 = vmatpush.bf16.msra.mxu0 0
    %366 = vmatpush.bf16.msra.mxu0 0
    %367 = vmatpush.bf16.msra.mxu0 0
    %368 = vmatpush.bf16.msra.mxu0 0
    %369 = vmatpush.bf16.msra.mxu0 %v309
    %370 = vmatpush.bf16.msra.mxu0 %v301
    %371 = vmatpush.bf16.msra.mxu0 %v293
    %372 = vmatpush.bf16.msra.mxu0 %v285
    %373 = vmatmul.bf16.gmra.mxu0 %v350
    %v374 = vpop.f32.mrf.mxu0
    %v375 = vadd.f32 %v173, %v374
    %v376 = vpop.f32.mrf.mxu0
    %377 = vdwg.mxu0
    %378 = vmatpush.bf16.msra.mxu0 0
    %379 = vmatpush.bf16.msra.mxu0 0
    %380 = vmatpush.bf16.msra.mxu0 0
    %381 = vmatpush.bf16.msra.mxu0 0
    %382 = vmatpush.bf16.msra.mxu0 %v310
    %383 = vmatpush.bf16.msra.mxu0 %v302
    %384 = vmatpush.bf16.msra.mxu0 %v294
    %385 = vmatpush.bf16.msra.mxu0 %v286
    %386 = vmatmul.bf16.gmra.mxu0 %v350
    %v387 = vpop.f32.mrf.mxu0
    %v388 = vadd.f32 %v174, %v387
    %v389 = vpop.f32.mrf.mxu0
    %390 = vdwg.mxu0
    %391 = vmatpush.bf16.msra.mxu0 0
    %392 = vmatpush.bf16.msra.mxu0 0
    %393 = vmatpush.bf16.msra.mxu0 0
    %394 = vmatpush.bf16.msra.mxu0 0
    %395 = vmatpush.bf16.msra.mxu0 %v311
    %396 = vmatpush.bf16.msra.mxu0 %v303
    %397 = vmatpush.bf16.msra.mxu0 %v295
    %398 = vmatpush.bf16.msra.mxu0 %v287
    %399 = vmatmul.bf16.gmra.mxu0 %v350
    %v400 = vpop.f32.mrf.mxu0
    %v401 = vadd.f32 %v175, %v400
    %v402 = vpop.f32.mrf.mxu0
    %403 = vdwg.mxu0
    %404 = vmatpush.bf16.msra.mxu0 0
    %405 = vmatpush.bf16.msra.mxu0 0
    %406 = vmatpush.bf16.msra.mxu0 0
    %407 = vmatpush.bf16.msra.mxu0 0
    %408 = vmatpush.bf16.msra.mxu0 %v312
    %409 = vmatpush.bf16.msra.mxu0 %v304
    %410 = vmatpush.bf16.msra.mxu0 %v296
    %411 = vmatpush.bf16.msra.mxu0 %v288
    %412 = vmatmul.bf16.gmra.mxu0 %v350
    %v413 = vpop.f32.mrf.mxu0
    %v414 = vadd.f32 %v176, %v413
    %v415 = vpop.f32.mrf.mxu0
    %416 = vdwg.mxu0
    %417 = vmatpush.bf16.msra.mxu0 0
    %418 = vmatpush.bf16.msra.mxu0 0
    %419 = vmatpush.bf16.msra.mxu0 0
    %420 = vmatpush.bf16.msra.mxu0 0
    %421 = vmatpush.bf16.msra.mxu0 %v313
    %422 = vmatpush.bf16.msra.mxu0 %v305
    %423 = vmatpush.bf16.msra.mxu0 %v297
    %424 = vmatpush.bf16.msra.mxu0 %v289
    %425 = vmatmul.bf16.gmra.mxu0 %v350
    %v426 = vpop.f32.mrf.mxu0
    %v427 = vadd.f32 %v177, %v426
    %v428 = vpop.f32.mrf.mxu0
    %429 = vdwg.mxu0
    %430 = vmatpush.bf16.msra.mxu0 0
    %431 = vmatpush.bf16.msra.mxu0 0
    %432 = vmatpush.bf16.msra.mxu0 0
    %433 = vmatpush.bf16.msra.mxu0 0
    %434 = vmatpush.bf16.msra.mxu0 %v314
    %435 = vmatpush.bf16.msra.mxu0 %v306
    %436 = vmatpush.bf16.msra.mxu0 %v298
    %437 = vmatpush.bf16.msra.mxu0 %v290
    %438 = vmatmul.bf16.gmra.mxu0 %v350
    %v439 = vpop.f32.mrf.mxu0
    %v440 = vadd.f32 %v178, %v439
    %v441 = vpop.f32.mrf.mxu0
    %442 = vdwg.mxu0
    %443 = vmatpush.bf16.msra.mxu0 0
    %444 = vmatpush.bf16.msra.mxu0 0
    %445 = vmatpush.bf16.msra.mxu0 0
    %446 = vmatpush.bf16.msra.mxu0 0
    %447 = vmatpush.bf16.msra.mxu0 %v315
    %448 = vmatpush.bf16.msra.mxu0 %v307
    %449 = vmatpush.bf16.msra.mxu0 %v299
    %450 = vmatpush.bf16.msra.mxu0 %v291
    %451 = vmatmul.bf16.gmra.mxu0 %v350
    %v452 = vpop.f32.mrf.mxu0
    %v453 = vadd.f32 %v179, %v452
    %v454 = vpop.f32.mrf.mxu0
    %455 = vdwg.mxu0
    %v456 = vmax.f32 %v362, 0.0
    %v457 = vmax.f32 %v375, 0.0
    %v458 = vmax.f32 %v388, 0.0
    %v459 = vmax.f32 %v401, 0.0
    %v460 = vmax.f32 %v414, 0.0
    %v461 = vmax.f32 %v427, 0.0
    %v462 = vmax.f32 %v440, 0.0
    %v463 = vmax.f32 %v453, 0.0
    %v464 = vpack.c.bf16 %v456, %v456
    %v465 = vpack.c.bf16 %v457, %v457
    %v466 = vpack.c.bf16 %v458, %v458
    %v467 = vpack.c.bf16 %v459, %v459
    %v468 = vpack.c.bf16 %v460, %v460
    %v469 = vpack.c.bf16 %v461, %v461
    %v470 = vpack.c.bf16 %v462, %v462
    %v471 = vpack.c.bf16 %v463, %v463
    %v472 = vld [vmem:[#allocation7] sm:$0xff]
    %v473 = vld [vmem:[#allocation7 + $0x8] sm:$0xff]
    %v474 = vld [vmem:[#allocation7 + $0x10] sm:$0xff]
    %v475 = vld [vmem:[#allocation7 + $0x18] sm:$0xff]
    %v476 = vld [vmem:[#allocation7 + $0x20] sm:$0xff]
    %v477 = vld [vmem:[#allocation7 + $0x28] sm:$0xff]
    %v478 = vld [vmem:[#allocation7 + $0x30] sm:$0xff]
    %v479 = vld [vmem:[#allocation7 + $0x38] sm:$0xff]
    %v480 = vld [vmem:[#allocation7 + $0x40] sm:$0xff]
    %v481 = vld [vmem:[#allocation7 + $0x48] sm:$0xff]
    %v482 = vld [vmem:[#allocation7 + $0x50] sm:$0xff]
    %v483 = vld [vmem:[#allocation7 + $0x58] sm:$0xff]
    %v484 = vld [vmem:[#allocation7 + $0x60] sm:$0xff]
    %v485 = vld [vmem:[#allocation7 + $0x68] sm:$0xff]
    %v486 = vld [vmem:[#allocation7 + $0x70] sm:$0xff]
    %v487 = vld [vmem:[#allocation7 + $0x78] sm:$0xff]
    %v488 = vld [vmem:[#allocation7 + $0x80] sm:$0xff]
    %v489 = vld [vmem:[#allocation7 + $0x88] sm:$0xff]
    %v490 = vld [vmem:[#allocation7 + $0x90] sm:$0xff]
    %v491 = vld [vmem:[#allocation7 + $0x98] sm:$0xff]
    %v492 = vld [vmem:[#allocation7 + $0xa0] sm:$0xff]
    %v493 = vld [vmem:[#allocation7 + $0xa8] sm:$0xff]
    %v494 = vld [vmem:[#allocation7 + $0xb0] sm:$0xff]
    %v495 = vld [vmem:[#allocation7 + $0xb8] sm:$0xff]
    %v496 = vld [vmem:[#allocation7 + $0xc0] sm:$0xff]
    %v497 = vld [vmem:[#allocation7 + $0xc8] sm:$0xff]
    %v498 = vld [vmem:[#allocation7 + $0xd0] sm:$0xff]
    %v499 = vld [vmem:[#allocation7 + $0xd8] sm:$0xff]
    %v500 = vld [vmem:[#allocation7 + $0xe0] sm:$0xff]
    %v501 = vld [vmem:[#allocation7 + $0xe8] sm:$0xff]
    %v502 = vld [vmem:[#allocation7 + $0xf0] sm:$0xff]
    %v503 = vld [vmem:[#allocation7 + $0xf8] sm:$0xff]
    %v504 = vld [vmem:[#allocation7 + $0x100] sm:$0xff]
    %v505 = vld [vmem:[#allocation7 + $0x108] sm:$0xff]
    %v506 = vld [vmem:[#allocation7 + $0x110] sm:$0xff]
    %v507 = vld [vmem:[#allocation7 + $0x118] sm:$0xff]
    %v508 = vld [vmem:[#allocation7 + $0x120] sm:$0xff]
    %v509 = vld [vmem:[#allocation7 + $0x128] sm:$0xff]
    %v510 = vld [vmem:[#allocation7 + $0x130] sm:$0xff]
    %v511 = vld [vmem:[#allocation7 + $0x138] sm:$0xff]
    %v512 = vld [vmem:[#allocation7 + $0x140] sm:$0xff]
    %v513 = vld [vmem:[#allocation7 + $0x148] sm:$0xff]
    %v514 = vld [vmem:[#allocation7 + $0x150] sm:$0xff]
    %v515 = vld [vmem:[#allocation7 + $0x158] sm:$0xff]
    %v516 = vld [vmem:[#allocation7 + $0x160] sm:$0xff]
    %v517 = vld [vmem:[#allocation7 + $0x168] sm:$0xff]
    %v518 = vld [vmem:[#allocation7 + $0x170] sm:$0xff]
    %v519 = vld [vmem:[#allocation7 + $0x178] sm:$0xff]
    %v520 = vld [vmem:[#allocation7 + $0x180] sm:$0xff]
    %v521 = vld [vmem:[#allocation7 + $0x188] sm:$0xff]
    %v522 = vld [vmem:[#allocation7 + $0x190] sm:$0xff]
    %v523 = vld [vmem:[#allocation7 + $0x198] sm:$0xff]
    %v524 = vld [vmem:[#allocation7 + $0x1a0] sm:$0xff]
    %v525 = vld [vmem:[#allocation7 + $0x1a8] sm:$0xff]
    %v526 = vld [vmem:[#allocation7 + $0x1b0] sm:$0xff]
    %v527 = vld [vmem:[#allocation7 + $0x1b8] sm:$0xff]
    %v528 = vld [vmem:[#allocation7 + $0x1c0] sm:$0xff]
    %v529 = vld [vmem:[#allocation7 + $0x1c8] sm:$0xff]
    %v530 = vld [vmem:[#allocation7 + $0x1d0] sm:$0xff]
    %v531 = vld [vmem:[#allocation7 + $0x1d8] sm:$0xff]
    %v532 = vld [vmem:[#allocation7 + $0x1e0] sm:$0xff]
    %v533 = vld [vmem:[#allocation7 + $0x1e8] sm:$0xff]
    %v534 = vld [vmem:[#allocation7 + $0x1f0] sm:$0xff]
    %v535 = vld [vmem:[#allocation7 + $0x1f8] sm:$0xff]
    %v536 = vld [vmem:[#allocation7 + $0x200] sm:$0xff]
    %v537 = vld [vmem:[#allocation7 + $0x208] sm:$0xff]
    %v538 = vld [vmem:[#allocation7 + $0x210] sm:$0xff]
    %v539 = vld [vmem:[#allocation7 + $0x218] sm:$0xff]
    %v540 = vld [vmem:[#allocation7 + $0x220] sm:$0xff]
    %v541 = vld [vmem:[#allocation7 + $0x228] sm:$0xff]
    %v542 = vld [vmem:[#allocation7 + $0x230] sm:$0xff]
    %v543 = vld [vmem:[#allocation7 + $0x238] sm:$0xff]
    %v544 = vld [vmem:[#allocation7 + $0x240] sm:$0xff]
    %v545 = vld [vmem:[#allocation7 + $0x248] sm:$0xff]
    %v546 = vld [vmem:[#allocation7 + $0x250] sm:$0xff]
    %v547 = vld [vmem:[#allocation7 + $0x258] sm:$0xff]
    %v548 = vld [vmem:[#allocation7 + $0x260] sm:$0xff]
    %v549 = vld [vmem:[#allocation7 + $0x268] sm:$0xff]
    %v550 = vld [vmem:[#allocation7 + $0x270] sm:$0xff]
    %v551 = vld [vmem:[#allocation7 + $0x278] sm:$0xff]
    %v552 = vld [vmem:[#allocation7 + $0x280] sm:$0xff]
    %v553 = vld [vmem:[#allocation7 + $0x288] sm:$0xff]
    %v554 = vld [vmem:[#allocation7 + $0x290] sm:$0xff]
    %v555 = vld [vmem:[#allocation7 + $0x298] sm:$0xff]
    %v556 = vld [vmem:[#allocation7 + $0x2a0] sm:$0xff]
    %v557 = vld [vmem:[#allocation7 + $0x2a8] sm:$0xff]
    %v558 = vld [vmem:[#allocation7 + $0x2b0] sm:$0xff]
    %v559 = vld [vmem:[#allocation7 + $0x2b8] sm:$0xff]
    %v560 = vld [vmem:[#allocation7 + $0x2c0] sm:$0xff]
    %v561 = vld [vmem:[#allocation7 + $0x2c8] sm:$0xff]
    %v562 = vld [vmem:[#allocation7 + $0x2d0] sm:$0xff]
    %v563 = vld [vmem:[#allocation7 + $0x2d8] sm:$0xff]
    %v564 = vld [vmem:[#allocation7 + $0x2e0] sm:$0xff]
    %v565 = vld [vmem:[#allocation7 + $0x2e8] sm:$0xff]
    %v566 = vld [vmem:[#allocation7 + $0x2f0] sm:$0xff]
    %v567 = vld [vmem:[#allocation7 + $0x2f8] sm:$0xff]
    %v568 = vld [vmem:[#allocation7 + $0x300] sm:$0xff]
    %v569 = vld [vmem:[#allocation7 + $0x308] sm:$0xff]
    %v570 = vld [vmem:[#allocation7 + $0x310] sm:$0xff]
    %v571 = vld [vmem:[#allocation7 + $0x318] sm:$0xff]
    %v572 = vld [vmem:[#allocation7 + $0x320] sm:$0xff]
    %v573 = vld [vmem:[#allocation7 + $0x328] sm:$0xff]
    %v574 = vld [vmem:[#allocation7 + $0x330] sm:$0xff]
    %v575 = vld [vmem:[#allocation7 + $0x338] sm:$0xff]
    %v576 = vld [vmem:[#allocation7 + $0x340] sm:$0xff]
    %v577 = vld [vmem:[#allocation7 + $0x348] sm:$0xff]
    %v578 = vld [vmem:[#allocation7 + $0x350] sm:$0xff]
    %v579 = vld [vmem:[#allocation7 + $0x358] sm:$0xff]
    %v580 = vld [vmem:[#allocation7 + $0x360] sm:$0xff]
    %v581 = vld [vmem:[#allocation7 + $0x368] sm:$0xff]
    %v582 = vld [vmem:[#allocation7 + $0x370] sm:$0xff]
    %v583 = vld [vmem:[#allocation7 + $0x378] sm:$0xff]
    %v584 = vld [vmem:[#allocation7 + $0x380] sm:$0xff]
    %v585 = vld [vmem:[#allocation7 + $0x388] sm:$0xff]
    %v586 = vld [vmem:[#allocation7 + $0x390] sm:$0xff]
    %v587 = vld [vmem:[#allocation7 + $0x398] sm:$0xff]
    %v588 = vld [vmem:[#allocation7 + $0x3a0] sm:$0xff]
    %v589 = vld [vmem:[#allocation7 + $0x3a8] sm:$0xff]
    %v590 = vld [vmem:[#allocation7 + $0x3b0] sm:$0xff]
    %v591 = vld [vmem:[#allocation7 + $0x3b8] sm:$0xff]
    %v592 = vld [vmem:[#allocation7 + $0x3c0] sm:$0xff]
    %v593 = vld [vmem:[#allocation7 + $0x3c8] sm:$0xff]
    %v594 = vld [vmem:[#allocation7 + $0x3d0] sm:$0xff]
    %v595 = vld [vmem:[#allocation7 + $0x3d8] sm:$0xff]
    %v596 = vld [vmem:[#allocation7 + $0x3e0] sm:$0xff]
    %v597 = vld [vmem:[#allocation7 + $0x3e8] sm:$0xff]
    %v598 = vld [vmem:[#allocation7 + $0x3f0] sm:$0xff]
    %v599 = vld [vmem:[#allocation7 + $0x3f8] sm:$0xff]
    %v600 = vld [vmem:[#allocation7 + $0x400] sm:$0xff]
    %v601 = vld [vmem:[#allocation7 + $0x408] sm:$0xff]
    %v602 = vld [vmem:[#allocation7 + $0x410] sm:$0xff]
    %v603 = vld [vmem:[#allocation7 + $0x418] sm:$0xff]
    %v604 = vld [vmem:[#allocation7 + $0x420] sm:$0xff]
    %v605 = vld [vmem:[#allocation7 + $0x428] sm:$0xff]
    %v606 = vld [vmem:[#allocation7 + $0x430] sm:$0xff]
    %v607 = vld [vmem:[#allocation7 + $0x438] sm:$0xff]
    %v608 = vld [vmem:[#allocation7 + $0x440] sm:$0xff]
    %v609 = vld [vmem:[#allocation7 + $0x448] sm:$0xff]
    %v610 = vld [vmem:[#allocation7 + $0x450] sm:$0xff]
    %v611 = vld [vmem:[#allocation7 + $0x458] sm:$0xff]
    %v612 = vld [vmem:[#allocation7 + $0x460] sm:$0xff]
    %v613 = vld [vmem:[#allocation7 + $0x468] sm:$0xff]
    %v614 = vld [vmem:[#allocation7 + $0x470] sm:$0xff]
    %v615 = vld [vmem:[#allocation7 + $0x478] sm:$0xff]
    %v616 = vld [vmem:[#allocation7 + $0x480] sm:$0xff]
    %v617 = vld [vmem:[#allocation7 + $0x488] sm:$0xff]
    %v618 = vld [vmem:[#allocation7 + $0x490] sm:$0xff]
    %v619 = vld [vmem:[#allocation7 + $0x498] sm:$0xff]
    %v620 = vld [vmem:[#allocation7 + $0x4a0] sm:$0xff]
    %v621 = vld [vmem:[#allocation7 + $0x4a8] sm:$0xff]
    %v622 = vld [vmem:[#allocation7 + $0x4b0] sm:$0xff]
    %v623 = vld [vmem:[#allocation7 + $0x4b8] sm:$0xff]
    %v624 = vld [vmem:[#allocation7 + $0x4c0] sm:$0xff]
    %v625 = vld [vmem:[#allocation7 + $0x4c8] sm:$0xff]
    %v626 = vld [vmem:[#allocation7 + $0x4d0] sm:$0xff]
    %v627 = vld [vmem:[#allocation7 + $0x4d8] sm:$0xff]
    %v628 = vld [vmem:[#allocation7 + $0x4e0] sm:$0xff]
    %v629 = vld [vmem:[#allocation7 + $0x4e8] sm:$0xff]
    %v630 = vld [vmem:[#allocation7 + $0x4f0] sm:$0xff]
    %v631 = vld [vmem:[#allocation7 + $0x4f8] sm:$0xff]
    %v632 = vld [vmem:[#allocation7 + $0x500] sm:$0xff]
    %v633 = vld [vmem:[#allocation7 + $0x508] sm:$0xff]
    %v634 = vld [vmem:[#allocation7 + $0x510] sm:$0xff]
    %v635 = vld [vmem:[#allocation7 + $0x518] sm:$0xff]
    %v636 = vld [vmem:[#allocation7 + $0x520] sm:$0xff]
    %v637 = vld [vmem:[#allocation7 + $0x528] sm:$0xff]
    %v638 = vld [vmem:[#allocation7 + $0x530] sm:$0xff]
    %v639 = vld [vmem:[#allocation7 + $0x538] sm:$0xff]
    %v640 = vld [vmem:[#allocation7 + $0x540] sm:$0xff]
    %v641 = vld [vmem:[#allocation7 + $0x548] sm:$0xff]
    %v642 = vld [vmem:[#allocation7 + $0x550] sm:$0xff]
    %v643 = vld [vmem:[#allocation7 + $0x558] sm:$0xff]
    %v644 = vld [vmem:[#allocation7 + $0x560] sm:$0xff]
    %v645 = vld [vmem:[#allocation7 + $0x568] sm:$0xff]
    %v646 = vld [vmem:[#allocation7 + $0x570] sm:$0xff]
    %v647 = vld [vmem:[#allocation7 + $0x578] sm:$0xff]
    %v648 = vld [vmem:[#allocation7 + $0x580] sm:$0xff]
    %v649 = vld [vmem:[#allocation7 + $0x588] sm:$0xff]
    %v650 = vld [vmem:[#allocation7 + $0x590] sm:$0xff]
    %v651 = vld [vmem:[#allocation7 + $0x598] sm:$0xff]
    %v652 = vld [vmem:[#allocation7 + $0x5a0] sm:$0xff]
    %v653 = vld [vmem:[#allocation7 + $0x5a8] sm:$0xff]
    %v654 = vld [vmem:[#allocation7 + $0x5b0] sm:$0xff]
    %v655 = vld [vmem:[#allocation7 + $0x5b8] sm:$0xff]
    %v656 = vld [vmem:[#allocation7 + $0x5c0] sm:$0xff]
    %v657 = vld [vmem:[#allocation7 + $0x5c8] sm:$0xff]
    %v658 = vld [vmem:[#allocation7 + $0x5d0] sm:$0xff]
    %v659 = vld [vmem:[#allocation7 + $0x5d8] sm:$0xff]
    %v660 = vld [vmem:[#allocation7 + $0x5e0] sm:$0xff]
    %v661 = vld [vmem:[#allocation7 + $0x5e8] sm:$0xff]
    %v662 = vld [vmem:[#allocation7 + $0x5f0] sm:$0xff]
    %v663 = vld [vmem:[#allocation7 + $0x5f8] sm:$0xff]
    %v664 = vld [vmem:[#allocation7 + $0x600] sm:$0xff]
    %v665 = vld [vmem:[#allocation7 + $0x608] sm:$0xff]
    %v666 = vld [vmem:[#allocation7 + $0x610] sm:$0xff]
    %v667 = vld [vmem:[#allocation7 + $0x618] sm:$0xff]
    %v668 = vld [vmem:[#allocation7 + $0x620] sm:$0xff]
    %v669 = vld [vmem:[#allocation7 + $0x628] sm:$0xff]
    %v670 = vld [vmem:[#allocation7 + $0x630] sm:$0xff]
    %v671 = vld [vmem:[#allocation7 + $0x638] sm:$0xff]
    %v672 = vld [vmem:[#allocation7 + $0x640] sm:$0xff]
    %v673 = vld [vmem:[#allocation7 + $0x648] sm:$0xff]
    %v674 = vld [vmem:[#allocation7 + $0x650] sm:$0xff]
    %v675 = vld [vmem:[#allocation7 + $0x658] sm:$0xff]
    %v676 = vld [vmem:[#allocation7 + $0x660] sm:$0xff]
    %v677 = vld [vmem:[#allocation7 + $0x668] sm:$0xff]
    %v678 = vld [vmem:[#allocation7 + $0x670] sm:$0xff]
    %v679 = vld [vmem:[#allocation7 + $0x678] sm:$0xff]
    %v680 = vld [vmem:[#allocation7 + $0x680] sm:$0xff]
    %v681 = vld [vmem:[#allocation7 + $0x688] sm:$0xff]
    %v682 = vld [vmem:[#allocation7 + $0x690] sm:$0xff]
    %v683 = vld [vmem:[#allocation7 + $0x698] sm:$0xff]
    %v684 = vld [vmem:[#allocation7 + $0x6a0] sm:$0xff]
    %v685 = vld [vmem:[#allocation7 + $0x6a8] sm:$0xff]
    %v686 = vld [vmem:[#allocation7 + $0x6b0] sm:$0xff]
    %v687 = vld [vmem:[#allocation7 + $0x6b8] sm:$0xff]
    %v688 = vld [vmem:[#allocation7 + $0x6c0] sm:$0xff]
    %v689 = vld [vmem:[#allocation7 + $0x6c8] sm:$0xff]
    %v690 = vld [vmem:[#allocation7 + $0x6d0] sm:$0xff]
    %v691 = vld [vmem:[#allocation7 + $0x6d8] sm:$0xff]
    %v692 = vld [vmem:[#allocation7 + $0x6e0] sm:$0xff]
    %v693 = vld [vmem:[#allocation7 + $0x6e8] sm:$0xff]
    %v694 = vld [vmem:[#allocation7 + $0x6f0] sm:$0xff]
    %v695 = vld [vmem:[#allocation7 + $0x6f8] sm:$0xff]
    %v696 = vld [vmem:[#allocation7 + $0x700] sm:$0xff]
    %v697 = vld [vmem:[#allocation7 + $0x708] sm:$0xff]
    %v698 = vld [vmem:[#allocation7 + $0x710] sm:$0xff]
    %v699 = vld [vmem:[#allocation7 + $0x718] sm:$0xff]
    %v700 = vld [vmem:[#allocation7 + $0x720] sm:$0xff]
    %v701 = vld [vmem:[#allocation7 + $0x728] sm:$0xff]
    %v702 = vld [vmem:[#allocation7 + $0x730] sm:$0xff]
    %v703 = vld [vmem:[#allocation7 + $0x738] sm:$0xff]
    %v704 = vld [vmem:[#allocation7 + $0x740] sm:$0xff]
    %v705 = vld [vmem:[#allocation7 + $0x748] sm:$0xff]
    %v706 = vld [vmem:[#allocation7 + $0x750] sm:$0xff]
    %v707 = vld [vmem:[#allocation7 + $0x758] sm:$0xff]
    %v708 = vld [vmem:[#allocation7 + $0x760] sm:$0xff]
    %v709 = vld [vmem:[#allocation7 + $0x768] sm:$0xff]
    %v710 = vld [vmem:[#allocation7 + $0x770] sm:$0xff]
    %v711 = vld [vmem:[#allocation7 + $0x778] sm:$0xff]
    %v712 = vld [vmem:[#allocation7 + $0x780] sm:$0xff]
    %v713 = vld [vmem:[#allocation7 + $0x788] sm:$0xff]
    %v714 = vld [vmem:[#allocation7 + $0x790] sm:$0xff]
    %v715 = vld [vmem:[#allocation7 + $0x798] sm:$0xff]
    %v716 = vld [vmem:[#allocation7 + $0x7a0] sm:$0xff]
    %v717 = vld [vmem:[#allocation7 + $0x7a8] sm:$0xff]
    %v718 = vld [vmem:[#allocation7 + $0x7b0] sm:$0xff]
    %v719 = vld [vmem:[#allocation7 + $0x7b8] sm:$0xff]
    %v720 = vld [vmem:[#allocation7 + $0x7c0] sm:$0xff]
    %v721 = vld [vmem:[#allocation7 + $0x7c8] sm:$0xff]
    %v722 = vld [vmem:[#allocation7 + $0x7d0] sm:$0xff]
    %v723 = vld [vmem:[#allocation7 + $0x7d8] sm:$0xff]
    %v724 = vld [vmem:[#allocation7 + $0x7e0] sm:$0xff]
    %v725 = vld [vmem:[#allocation7 + $0x7e8] sm:$0xff]
    %v726 = vld [vmem:[#allocation7 + $0x7f0] sm:$0xff]
    %v727 = vld [vmem:[#allocation7 + $0x7f8] sm:$0xff]
    %v728 = vld [vmem:[#allocation9] sm:$0xf]
    %v730 = vperm.slane %v728, 0
    %v731 = vperm.slane %v728, 1
    %v732 = vperm.slane %v728, 2
    %v733 = vperm.slane %v728, 3
    %v994 = vunpack.c.l.b16 %v472
    %v995 = vunpack.c.h.b16 %v472
    %v996 = vunpack.c.l.b16 %v473
    %v997 = vunpack.c.h.b16 %v473
    %v998 = vunpack.c.l.b16 %v474
    %v999 = vunpack.c.h.b16 %v474
    %v1000 = vunpack.c.l.b16 %v475
    %v1001 = vunpack.c.h.b16 %v475
    %v1002 = vunpack.c.l.b16 %v476
    %v1003 = vunpack.c.h.b16 %v476
    %v1004 = vunpack.c.l.b16 %v477
    %v1005 = vunpack.c.h.b16 %v477
    %v1006 = vunpack.c.l.b16 %v478
    %v1007 = vunpack.c.h.b16 %v478
    %v1008 = vunpack.c.l.b16 %v479
    %v1009 = vunpack.c.h.b16 %v479
    %v1010 = vunpack.c.l.b16 %v480
    %v1011 = vunpack.c.h.b16 %v480
    %v1012 = vunpack.c.l.b16 %v481
    %v1013 = vunpack.c.h.b16 %v481
    %v1014 = vunpack.c.l.b16 %v482
    %v1015 = vunpack.c.h.b16 %v482
    %v1016 = vunpack.c.l.b16 %v483
    %v1017 = vunpack.c.h.b16 %v483
    %v1018 = vunpack.c.l.b16 %v484
    %v1019 = vunpack.c.h.b16 %v484
    %v1020 = vunpack.c.l.b16 %v485
    %v1021 = vunpack.c.h.b16 %v485
    %v1022 = vunpack.c.l.b16 %v486
    %v1023 = vunpack.c.h.b16 %v486
    %v1024 = vunpack.c.l.b16 %v487
    %v1025 = vunpack.c.h.b16 %v487
    %v1026 = vunpack.c.l.b16 %v488
    %v1027 = vunpack.c.h.b16 %v488
    %v1028 = vunpack.c.l.b16 %v489
    %v1029 = vunpack.c.h.b16 %v489
    %v1030 = vunpack.c.l.b16 %v490
    %v1031 = vunpack.c.h.b16 %v490
    %v1032 = vunpack.c.l.b16 %v491
    %v1033 = vunpack.c.h.b16 %v491
    %v1034 = vunpack.c.l.b16 %v492
    %v1035 = vunpack.c.h.b16 %v492
    %v1036 = vunpack.c.l.b16 %v493
    %v1037 = vunpack.c.h.b16 %v493
    %v1038 = vunpack.c.l.b16 %v494
    %v1039 = vunpack.c.h.b16 %v494
    %v1040 = vunpack.c.l.b16 %v495
    %v1041 = vunpack.c.h.b16 %v495
    %v1042 = vunpack.c.l.b16 %v496
    %v1043 = vunpack.c.h.b16 %v496
    %v1044 = vunpack.c.l.b16 %v497
    %v1045 = vunpack.c.h.b16 %v497
    %v1046 = vunpack.c.l.b16 %v498
    %v1047 = vunpack.c.h.b16 %v498
    %v1048 = vunpack.c.l.b16 %v499
    %v1049 = vunpack.c.h.b16 %v499
    %v1050 = vunpack.c.l.b16 %v500
    %v1051 = vunpack.c.h.b16 %v500
    %v1052 = vunpack.c.l.b16 %v501
    %v1053 = vunpack.c.h.b16 %v501
    %v1054 = vunpack.c.l.b16 %v502
    %v1055 = vunpack.c.h.b16 %v502
    %v1056 = vunpack.c.l.b16 %v503
    %v1057 = vunpack.c.h.b16 %v503
    %v1058 = vunpack.c.l.b16 %v504
    %v1059 = vunpack.c.h.b16 %v504
    %v1060 = vunpack.c.l.b16 %v505
    %v1061 = vunpack.c.h.b16 %v505
    %v1062 = vunpack.c.l.b16 %v506
    %v1063 = vunpack.c.h.b16 %v506
    %v1064 = vunpack.c.l.b16 %v507
    %v1065 = vunpack.c.h.b16 %v507
    %v1066 = vunpack.c.l.b16 %v508
    %v1067 = vunpack.c.h.b16 %v508
    %v1068 = vunpack.c.l.b16 %v509
    %v1069 = vunpack.c.h.b16 %v509
    %v1070 = vunpack.c.l.b16 %v510
    %v1071 = vunpack.c.h.b16 %v510
    %v1072 = vunpack.c.l.b16 %v511
    %v1073 = vunpack.c.h.b16 %v511
    %v1074 = vunpack.c.l.b16 %v512
    %v1075 = vunpack.c.h.b16 %v512
    %v1076 = vunpack.c.l.b16 %v513
    %v1077 = vunpack.c.h.b16 %v513
    %v1078 = vunpack.c.l.b16 %v514
    %v1079 = vunpack.c.h.b16 %v514
    %v1080 = vunpack.c.l.b16 %v515
    %v1081 = vunpack.c.h.b16 %v515
    %v1082 = vunpack.c.l.b16 %v516
    %v1083 = vunpack.c.h.b16 %v516
    %v1084 = vunpack.c.l.b16 %v517
    %v1085 = vunpack.c.h.b16 %v517
    %v1086 = vunpack.c.l.b16 %v518
    %v1087 = vunpack.c.h.b16 %v518
    %v1088 = vunpack.c.l.b16 %v519
    %v1089 = vunpack.c.h.b16 %v519
    %v1090 = vunpack.c.l.b16 %v520
    %v1091 = vunpack.c.h.b16 %v520
    %v1092 = vunpack.c.l.b16 %v521
    %v1093 = vunpack.c.h.b16 %v521
    %v1094 = vunpack.c.l.b16 %v522
    %v1095 = vunpack.c.h.b16 %v522
    %v1096 = vunpack.c.l.b16 %v523
    %v1097 = vunpack.c.h.b16 %v523
    %v1098 = vunpack.c.l.b16 %v524
    %v1099 = vunpack.c.h.b16 %v524
    %v1100 = vunpack.c.l.b16 %v525
    %v1101 = vunpack.c.h.b16 %v525
    %v1102 = vunpack.c.l.b16 %v526
    %v1103 = vunpack.c.h.b16 %v526
    %v1104 = vunpack.c.l.b16 %v527
    %v1105 = vunpack.c.h.b16 %v527
    %v1106 = vunpack.c.l.b16 %v528
    %v1107 = vunpack.c.h.b16 %v528
    %v1108 = vunpack.c.l.b16 %v529
    %v1109 = vunpack.c.h.b16 %v529
    %v1110 = vunpack.c.l.b16 %v530
    %v1111 = vunpack.c.h.b16 %v530
    %v1112 = vunpack.c.l.b16 %v531
    %v1113 = vunpack.c.h.b16 %v531
    %v1114 = vunpack.c.l.b16 %v532
    %v1115 = vunpack.c.h.b16 %v532
    %v1116 = vunpack.c.l.b16 %v533
    %v1117 = vunpack.c.h.b16 %v533
    %v1118 = vunpack.c.l.b16 %v534
    %v1119 = vunpack.c.h.b16 %v534
    %v1120 = vunpack.c.l.b16 %v535
    %v1121 = vunpack.c.h.b16 %v535
    %v1122 = vunpack.c.l.b16 %v536
    %v1123 = vunpack.c.h.b16 %v536
    %v1124 = vunpack.c.l.b16 %v537
    %v1125 = vunpack.c.h.b16 %v537
    %v1126 = vunpack.c.l.b16 %v538
    %v1127 = vunpack.c.h.b16 %v538
    %v1128 = vunpack.c.l.b16 %v539
    %v1129 = vunpack.c.h.b16 %v539
    %v1130 = vunpack.c.l.b16 %v540
    %v1131 = vunpack.c.h.b16 %v540
    %v1132 = vunpack.c.l.b16 %v541
    %v1133 = vunpack.c.h.b16 %v541
    %v1134 = vunpack.c.l.b16 %v542
    %v1135 = vunpack.c.h.b16 %v542
    %v1136 = vunpack.c.l.b16 %v543
    %v1137 = vunpack.c.h.b16 %v543
    %v1138 = vunpack.c.l.b16 %v544
    %v1139 = vunpack.c.h.b16 %v544
    %v1140 = vunpack.c.l.b16 %v545
    %v1141 = vunpack.c.h.b16 %v545
    %v1142 = vunpack.c.l.b16 %v546
    %v1143 = vunpack.c.h.b16 %v546
    %v1144 = vunpack.c.l.b16 %v547
    %v1145 = vunpack.c.h.b16 %v547
    %v1146 = vunpack.c.l.b16 %v548
    %v1147 = vunpack.c.h.b16 %v548
    %v1148 = vunpack.c.l.b16 %v549
    %v1149 = vunpack.c.h.b16 %v549
    %v1150 = vunpack.c.l.b16 %v550
    %v1151 = vunpack.c.h.b16 %v550
    %v1152 = vunpack.c.l.b16 %v551
    %v1153 = vunpack.c.h.b16 %v551
    %v1154 = vunpack.c.l.b16 %v552
    %v1155 = vunpack.c.h.b16 %v552
    %v1156 = vunpack.c.l.b16 %v553
    %v1157 = vunpack.c.h.b16 %v553
    %v1158 = vunpack.c.l.b16 %v554
    %v1159 = vunpack.c.h.b16 %v554
    %v1160 = vunpack.c.l.b16 %v555
    %v1161 = vunpack.c.h.b16 %v555
    %v1162 = vunpack.c.l.b16 %v556
    %v1163 = vunpack.c.h.b16 %v556
    %v1164 = vunpack.c.l.b16 %v557
    %v1165 = vunpack.c.h.b16 %v557
    %v1166 = vunpack.c.l.b16 %v558
    %v1167 = vunpack.c.h.b16 %v558
    %v1168 = vunpack.c.l.b16 %v559
    %v1169 = vunpack.c.h.b16 %v559
    %v1170 = vunpack.c.l.b16 %v560
    %v1171 = vunpack.c.h.b16 %v560
    %v1172 = vunpack.c.l.b16 %v561
    %v1173 = vunpack.c.h.b16 %v561
    %v1174 = vunpack.c.l.b16 %v562
    %v1175 = vunpack.c.h.b16 %v562
    %v1176 = vunpack.c.l.b16 %v563
    %v1177 = vunpack.c.h.b16 %v563
    %v1178 = vunpack.c.l.b16 %v564
    %v1179 = vunpack.c.h.b16 %v564
    %v1180 = vunpack.c.l.b16 %v565
    %v1181 = vunpack.c.h.b16 %v565
    %v1182 = vunpack.c.l.b16 %v566
    %v1183 = vunpack.c.h.b16 %v566
    %v1184 = vunpack.c.l.b16 %v567
    %v1185 = vunpack.c.h.b16 %v567
    %v1186 = vunpack.c.l.b16 %v568
    %v1187 = vunpack.c.h.b16 %v568
    %v1188 = vunpack.c.l.b16 %v569
    %v1189 = vunpack.c.h.b16 %v569
    %v1190 = vunpack.c.l.b16 %v570
    %v1191 = vunpack.c.h.b16 %v570
    %v1192 = vunpack.c.l.b16 %v571
    %v1193 = vunpack.c.h.b16 %v571
    %v1194 = vunpack.c.l.b16 %v572
    %v1195 = vunpack.c.h.b16 %v572
    %v1196 = vunpack.c.l.b16 %v573
    %v1197 = vunpack.c.h.b16 %v573
    %v1198 = vunpack.c.l.b16 %v574
    %v1199 = vunpack.c.h.b16 %v574
    %v1200 = vunpack.c.l.b16 %v575
    %v1201 = vunpack.c.h.b16 %v575
    %v1202 = vunpack.c.l.b16 %v576
    %v1203 = vunpack.c.h.b16 %v576
    %v1204 = vunpack.c.l.b16 %v577
    %v1205 = vunpack.c.h.b16 %v577
    %v1206 = vunpack.c.l.b16 %v578
    %v1207 = vunpack.c.h.b16 %v578
    %v1208 = vunpack.c.l.b16 %v579
    %v1209 = vunpack.c.h.b16 %v579
    %v1210 = vunpack.c.l.b16 %v580
    %v1211 = vunpack.c.h.b16 %v580
    %v1212 = vunpack.c.l.b16 %v581
    %v1213 = vunpack.c.h.b16 %v581
    %v1214 = vunpack.c.l.b16 %v582
    %v1215 = vunpack.c.h.b16 %v582
    %v1216 = vunpack.c.l.b16 %v583
    %v1217 = vunpack.c.h.b16 %v583
    %v1218 = vunpack.c.l.b16 %v584
    %v1219 = vunpack.c.h.b16 %v584
    %v1220 = vunpack.c.l.b16 %v585
    %v1221 = vunpack.c.h.b16 %v585
    %v1222 = vunpack.c.l.b16 %v586
    %v1223 = vunpack.c.h.b16 %v586
    %v1224 = vunpack.c.l.b16 %v587
    %v1225 = vunpack.c.h.b16 %v587
    %v1226 = vunpack.c.l.b16 %v588
    %v1227 = vunpack.c.h.b16 %v588
    %v1228 = vunpack.c.l.b16 %v589
    %v1229 = vunpack.c.h.b16 %v589
    %v1230 = vunpack.c.l.b16 %v590
    %v1231 = vunpack.c.h.b16 %v590
    %v1232 = vunpack.c.l.b16 %v591
    %v1233 = vunpack.c.h.b16 %v591
    %v1234 = vunpack.c.l.b16 %v592
    %v1235 = vunpack.c.h.b16 %v592
    %v1236 = vunpack.c.l.b16 %v593
    %v1237 = vunpack.c.h.b16 %v593
    %v1238 = vunpack.c.l.b16 %v594
    %v1239 = vunpack.c.h.b16 %v594
    %v1240 = vunpack.c.l.b16 %v595
    %v1241 = vunpack.c.h.b16 %v595
    %v1242 = vunpack.c.l.b16 %v596
    %v1243 = vunpack.c.h.b16 %v596
    %v1244 = vunpack.c.l.b16 %v597
    %v1245 = vunpack.c.h.b16 %v597
    %v1246 = vunpack.c.l.b16 %v598
    %v1247 = vunpack.c.h.b16 %v598
    %v1248 = vunpack.c.l.b16 %v599
    %v1249 = vunpack.c.h.b16 %v599
    %v1250 = vunpack.c.l.b16 %v600
    %v1251 = vunpack.c.h.b16 %v600
    %v1252 = vunpack.c.l.b16 %v601
    %v1253 = vunpack.c.h.b16 %v601
    %v1254 = vunpack.c.l.b16 %v602
    %v1255 = vunpack.c.h.b16 %v602
    %v1256 = vunpack.c.l.b16 %v603
    %v1257 = vunpack.c.h.b16 %v603
    %v1258 = vunpack.c.l.b16 %v604
    %v1259 = vunpack.c.h.b16 %v604
    %v1260 = vunpack.c.l.b16 %v605
    %v1261 = vunpack.c.h.b16 %v605
    %v1262 = vunpack.c.l.b16 %v606
    %v1263 = vunpack.c.h.b16 %v606
    %v1264 = vunpack.c.l.b16 %v607
    %v1265 = vunpack.c.h.b16 %v607
    %v1266 = vunpack.c.l.b16 %v608
    %v1267 = vunpack.c.h.b16 %v608
    %v1268 = vunpack.c.l.b16 %v609
    %v1269 = vunpack.c.h.b16 %v609
    %v1270 = vunpack.c.l.b16 %v610
    %v1271 = vunpack.c.h.b16 %v610
    %v1272 = vunpack.c.l.b16 %v611
    %v1273 = vunpack.c.h.b16 %v611
    %v1274 = vunpack.c.l.b16 %v612
    %v1275 = vunpack.c.h.b16 %v612
    %v1276 = vunpack.c.l.b16 %v613
    %v1277 = vunpack.c.h.b16 %v613
    %v1278 = vunpack.c.l.b16 %v614
    %v1279 = vunpack.c.h.b16 %v614
    %v1280 = vunpack.c.l.b16 %v615
    %v1281 = vunpack.c.h.b16 %v615
    %v1282 = vunpack.c.l.b16 %v616
    %v1283 = vunpack.c.h.b16 %v616
    %v1284 = vunpack.c.l.b16 %v617
    %v1285 = vunpack.c.h.b16 %v617
    %v1286 = vunpack.c.l.b16 %v618
    %v1287 = vunpack.c.h.b16 %v618
    %v1288 = vunpack.c.l.b16 %v619
    %v1289 = vunpack.c.h.b16 %v619
    %v1290 = vunpack.c.l.b16 %v620
    %v1291 = vunpack.c.h.b16 %v620
    %v1292 = vunpack.c.l.b16 %v621
    %v1293 = vunpack.c.h.b16 %v621
    %v1294 = vunpack.c.l.b16 %v622
    %v1295 = vunpack.c.h.b16 %v622
    %v1296 = vunpack.c.l.b16 %v623
    %v1297 = vunpack.c.h.b16 %v623
    %v1298 = vunpack.c.l.b16 %v624
    %v1299 = vunpack.c.h.b16 %v624
    %v1300 = vunpack.c.l.b16 %v625
    %v1301 = vunpack.c.h.b16 %v625
    %v1302 = vunpack.c.l.b16 %v626
    %v1303 = vunpack.c.h.b16 %v626
    %v1304 = vunpack.c.l.b16 %v627
    %v1305 = vunpack.c.h.b16 %v627
    %v1306 = vunpack.c.l.b16 %v628
    %v1307 = vunpack.c.h.b16 %v628
    %v1308 = vunpack.c.l.b16 %v629
    %v1309 = vunpack.c.h.b16 %v629
    %v1310 = vunpack.c.l.b16 %v630
    %v1311 = vunpack.c.h.b16 %v630
    %v1312 = vunpack.c.l.b16 %v631
    %v1313 = vunpack.c.h.b16 %v631
    %v1314 = vunpack.c.l.b16 %v632
    %v1315 = vunpack.c.h.b16 %v632
    %v1316 = vunpack.c.l.b16 %v633
    %v1317 = vunpack.c.h.b16 %v633
    %v1318 = vunpack.c.l.b16 %v634
    %v1319 = vunpack.c.h.b16 %v634
    %v1320 = vunpack.c.l.b16 %v635
    %v1321 = vunpack.c.h.b16 %v635
    %v1322 = vunpack.c.l.b16 %v636
    %v1323 = vunpack.c.h.b16 %v636
    %v1324 = vunpack.c.l.b16 %v637
    %v1325 = vunpack.c.h.b16 %v637
    %v1326 = vunpack.c.l.b16 %v638
    %v1327 = vunpack.c.h.b16 %v638
    %v1328 = vunpack.c.l.b16 %v639
    %v1329 = vunpack.c.h.b16 %v639
    %v1330 = vunpack.c.l.b16 %v640
    %v1331 = vunpack.c.h.b16 %v640
    %v1332 = vunpack.c.l.b16 %v641
    %v1333 = vunpack.c.h.b16 %v641
    %v1334 = vunpack.c.l.b16 %v642
    %v1335 = vunpack.c.h.b16 %v642
    %v1336 = vunpack.c.l.b16 %v643
    %v1337 = vunpack.c.h.b16 %v643
    %v1338 = vunpack.c.l.b16 %v644
    %v1339 = vunpack.c.h.b16 %v644
    %v1340 = vunpack.c.l.b16 %v645
    %v1341 = vunpack.c.h.b16 %v645
    %v1342 = vunpack.c.l.b16 %v646
    %v1343 = vunpack.c.h.b16 %v646
    %v1344 = vunpack.c.l.b16 %v647
    %v1345 = vunpack.c.h.b16 %v647
    %v1346 = vunpack.c.l.b16 %v648
    %v1347 = vunpack.c.h.b16 %v648
    %v1348 = vunpack.c.l.b16 %v649
    %v1349 = vunpack.c.h.b16 %v649
    %v1350 = vunpack.c.l.b16 %v650
    %v1351 = vunpack.c.h.b16 %v650
    %v1352 = vunpack.c.l.b16 %v651
    %v1353 = vunpack.c.h.b16 %v651
    %v1354 = vunpack.c.l.b16 %v652
    %v1355 = vunpack.c.h.b16 %v652
    %v1356 = vunpack.c.l.b16 %v653
    %v1357 = vunpack.c.h.b16 %v653
    %v1358 = vunpack.c.l.b16 %v654
    %v1359 = vunpack.c.h.b16 %v654
    %v1360 = vunpack.c.l.b16 %v655
    %v1361 = vunpack.c.h.b16 %v655
    %v1362 = vunpack.c.l.b16 %v656
    %v1363 = vunpack.c.h.b16 %v656
    %v1364 = vunpack.c.l.b16 %v657
    %v1365 = vunpack.c.h.b16 %v657
    %v1366 = vunpack.c.l.b16 %v658
    %v1367 = vunpack.c.h.b16 %v658
    %v1368 = vunpack.c.l.b16 %v659
    %v1369 = vunpack.c.h.b16 %v659
    %v1370 = vunpack.c.l.b16 %v660
    %v1371 = vunpack.c.h.b16 %v660
    %v1372 = vunpack.c.l.b16 %v661
    %v1373 = vunpack.c.h.b16 %v661
    %v1374 = vunpack.c.l.b16 %v662
    %v1375 = vunpack.c.h.b16 %v662
    %v1376 = vunpack.c.l.b16 %v663
    %v1377 = vunpack.c.h.b16 %v663
    %v1378 = vunpack.c.l.b16 %v664
    %v1379 = vunpack.c.h.b16 %v664
    %v1380 = vunpack.c.l.b16 %v665
    %v1381 = vunpack.c.h.b16 %v665
    %v1382 = vunpack.c.l.b16 %v666
    %v1383 = vunpack.c.h.b16 %v666
    %v1384 = vunpack.c.l.b16 %v667
    %v1385 = vunpack.c.h.b16 %v667
    %v1386 = vunpack.c.l.b16 %v668
    %v1387 = vunpack.c.h.b16 %v668
    %v1388 = vunpack.c.l.b16 %v669
    %v1389 = vunpack.c.h.b16 %v669
    %v1390 = vunpack.c.l.b16 %v670
    %v1391 = vunpack.c.h.b16 %v670
    %v1392 = vunpack.c.l.b16 %v671
    %v1393 = vunpack.c.h.b16 %v671
    %v1394 = vunpack.c.l.b16 %v672
    %v1395 = vunpack.c.h.b16 %v672
    %v1396 = vunpack.c.l.b16 %v673
    %v1397 = vunpack.c.h.b16 %v673
    %v1398 = vunpack.c.l.b16 %v674
    %v1399 = vunpack.c.h.b16 %v674
    %v1400 = vunpack.c.l.b16 %v675
    %v1401 = vunpack.c.h.b16 %v675
    %v1402 = vunpack.c.l.b16 %v676
    %v1403 = vunpack.c.h.b16 %v676
    %v1404 = vunpack.c.l.b16 %v677
    %v1405 = vunpack.c.h.b16 %v677
    %v1406 = vunpack.c.l.b16 %v678
    %v1407 = vunpack.c.h.b16 %v678
    %v1408 = vunpack.c.l.b16 %v679
    %v1409 = vunpack.c.h.b16 %v679
    %v1410 = vunpack.c.l.b16 %v680
    %v1411 = vunpack.c.h.b16 %v680
    %v1412 = vunpack.c.l.b16 %v681
    %v1413 = vunpack.c.h.b16 %v681
    %v1414 = vunpack.c.l.b16 %v682
    %v1415 = vunpack.c.h.b16 %v682
    %v1416 = vunpack.c.l.b16 %v683
    %v1417 = vunpack.c.h.b16 %v683
    %v1418 = vunpack.c.l.b16 %v684
    %v1419 = vunpack.c.h.b16 %v684
    %v1420 = vunpack.c.l.b16 %v685
    %v1421 = vunpack.c.h.b16 %v685
    %v1422 = vunpack.c.l.b16 %v686
    %v1423 = vunpack.c.h.b16 %v686
    %v1424 = vunpack.c.l.b16 %v687
    %v1425 = vunpack.c.h.b16 %v687
    %v1426 = vunpack.c.l.b16 %v688
    %v1427 = vunpack.c.h.b16 %v688
    %v1428 = vunpack.c.l.b16 %v689
    %v1429 = vunpack.c.h.b16 %v689
    %v1430 = vunpack.c.l.b16 %v690
    %v1431 = vunpack.c.h.b16 %v690
    %v1432 = vunpack.c.l.b16 %v691
    %v1433 = vunpack.c.h.b16 %v691
    %v1434 = vunpack.c.l.b16 %v692
    %v1435 = vunpack.c.h.b16 %v692
    %v1436 = vunpack.c.l.b16 %v693
    %v1437 = vunpack.c.h.b16 %v693
    %v1438 = vunpack.c.l.b16 %v694
    %v1439 = vunpack.c.h.b16 %v694
    %v1440 = vunpack.c.l.b16 %v695
    %v1441 = vunpack.c.h.b16 %v695
    %v1442 = vunpack.c.l.b16 %v696
    %v1443 = vunpack.c.h.b16 %v696
    %v1444 = vunpack.c.l.b16 %v697
    %v1445 = vunpack.c.h.b16 %v697
    %v1446 = vunpack.c.l.b16 %v698
    %v1447 = vunpack.c.h.b16 %v698
    %v1448 = vunpack.c.l.b16 %v699
    %v1449 = vunpack.c.h.b16 %v699
    %v1450 = vunpack.c.l.b16 %v700
    %v1451 = vunpack.c.h.b16 %v700
    %v1452 = vunpack.c.l.b16 %v701
    %v1453 = vunpack.c.h.b16 %v701
    %v1454 = vunpack.c.l.b16 %v702
    %v1455 = vunpack.c.h.b16 %v702
    %v1456 = vunpack.c.l.b16 %v703
    %v1457 = vunpack.c.h.b16 %v703
    %v1458 = vunpack.c.l.b16 %v704
    %v1459 = vunpack.c.h.b16 %v704
    %v1460 = vunpack.c.l.b16 %v705
    %v1461 = vunpack.c.h.b16 %v705
    %v1462 = vunpack.c.l.b16 %v706
    %v1463 = vunpack.c.h.b16 %v706
    %v1464 = vunpack.c.l.b16 %v707
    %v1465 = vunpack.c.h.b16 %v707
    %v1466 = vunpack.c.l.b16 %v708
    %v1467 = vunpack.c.h.b16 %v708
    %v1468 = vunpack.c.l.b16 %v709
    %v1469 = vunpack.c.h.b16 %v709
    %v1470 = vunpack.c.l.b16 %v710
    %v1471 = vunpack.c.h.b16 %v710
    %v1472 = vunpack.c.l.b16 %v711
    %v1473 = vunpack.c.h.b16 %v711
    %v1474 = vunpack.c.l.b16 %v712
    %v1475 = vunpack.c.h.b16 %v712
    %v1476 = vunpack.c.l.b16 %v713
    %v1477 = vunpack.c.h.b16 %v713
    %v1478 = vunpack.c.l.b16 %v714
    %v1479 = vunpack.c.h.b16 %v714
    %v1480 = vunpack.c.l.b16 %v715
    %v1481 = vunpack.c.h.b16 %v715
    %v1482 = vunpack.c.l.b16 %v716
    %v1483 = vunpack.c.h.b16 %v716
    %v1484 = vunpack.c.l.b16 %v717
    %v1485 = vunpack.c.h.b16 %v717
    %v1486 = vunpack.c.l.b16 %v718
    %v1487 = vunpack.c.h.b16 %v718
    %v1488 = vunpack.c.l.b16 %v719
    %v1489 = vunpack.c.h.b16 %v719
    %v1490 = vunpack.c.l.b16 %v720
    %v1491 = vunpack.c.h.b16 %v720
    %v1492 = vunpack.c.l.b16 %v721
    %v1493 = vunpack.c.h.b16 %v721
    %v1494 = vunpack.c.l.b16 %v722
    %v1495 = vunpack.c.h.b16 %v722
    %v1496 = vunpack.c.l.b16 %v723
    %v1497 = vunpack.c.h.b16 %v723
    %v1498 = vunpack.c.l.b16 %v724
    %v1499 = vunpack.c.h.b16 %v724
    %v1500 = vunpack.c.l.b16 %v725
    %v1501 = vunpack.c.h.b16 %v725
    %v1502 = vunpack.c.l.b16 %v726
    %v1503 = vunpack.c.h.b16 %v726
    %v1504 = vunpack.c.l.b16 %v727
    %v1505 = vunpack.c.h.b16 %v727
    %v1506 = vpack.c.b16 %v998, %v994
    %v1507 = vpack.c.b16 %v999, %v995
    %v1508 = vpack.c.b16 %v1000, %v996
    %v1509 = vpack.c.b16 %v1001, %v997
    %v1510 = vpack.c.b16 %v1006, %v1002
    %v1511 = vpack.c.b16 %v1007, %v1003
    %v1512 = vpack.c.b16 %v1008, %v1004
    %v1513 = vpack.c.b16 %v1009, %v1005
    %v1514 = vpack.c.b16 %v1014, %v1010
    %v1515 = vpack.c.b16 %v1015, %v1011
    %v1516 = vpack.c.b16 %v1016, %v1012
    %v1517 = vpack.c.b16 %v1017, %v1013
    %v1518 = vpack.c.b16 %v1022, %v1018
    %v1519 = vpack.c.b16 %v1023, %v1019
    %v1520 = vpack.c.b16 %v1024, %v1020
    %v1521 = vpack.c.b16 %v1025, %v1021
    %v1522 = vpack.c.b16 %v1030, %v1026
    %v1523 = vpack.c.b16 %v1031, %v1027
    %v1524 = vpack.c.b16 %v1032, %v1028
    %v1525 = vpack.c.b16 %v1033, %v1029
    %v1526 = vpack.c.b16 %v1038, %v1034
    %v1527 = vpack.c.b16 %v1039, %v1035
    %v1528 = vpack.c.b16 %v1040, %v1036
    %v1529 = vpack.c.b16 %v1041, %v1037
    %v1530 = vpack.c.b16 %v1046, %v1042
    %v1531 = vpack.c.b16 %v1047, %v1043
    %v1532 = vpack.c.b16 %v1048, %v1044
    %v1533 = vpack.c.b16 %v1049, %v1045
    %v1534 = vpack.c.b16 %v1054, %v1050
    %v1535 = vpack.c.b16 %v1055, %v1051
    %v1536 = vpack.c.b16 %v1056, %v1052
    %v1537 = vpack.c.b16 %v1057, %v1053
    %v1538 = vpack.c.b16 %v1062, %v1058
    %v1539 = vpack.c.b16 %v1063, %v1059
    %v1540 = vpack.c.b16 %v1064, %v1060
    %v1541 = vpack.c.b16 %v1065, %v1061
    %v1542 = vpack.c.b16 %v1070, %v1066
    %v1543 = vpack.c.b16 %v1071, %v1067
    %v1544 = vpack.c.b16 %v1072, %v1068
    %v1545 = vpack.c.b16 %v1073, %v1069
    %v1546 = vpack.c.b16 %v1078, %v1074
    %v1547 = vpack.c.b16 %v1079, %v1075
    %v1548 = vpack.c.b16 %v1080, %v1076
    %v1549 = vpack.c.b16 %v1081, %v1077
    %v1550 = vpack.c.b16 %v1086, %v1082
    %v1551 = vpack.c.b16 %v1087, %v1083
    %v1552 = vpack.c.b16 %v1088, %v1084
    %v1553 = vpack.c.b16 %v1089, %v1085
    %v1554 = vpack.c.b16 %v1094, %v1090
    %v1555 = vpack.c.b16 %v1095, %v1091
    %v1556 = vpack.c.b16 %v1096, %v1092
    %v1557 = vpack.c.b16 %v1097, %v1093
    %v1558 = vpack.c.b16 %v1102, %v1098
    %v1559 = vpack.c.b16 %v1103, %v1099
    %v1560 = vpack.c.b16 %v1104, %v1100
    %v1561 = vpack.c.b16 %v1105, %v1101
    %v1562 = vpack.c.b16 %v1110, %v1106
    %v1563 = vpack.c.b16 %v1111, %v1107
    %v1564 = vpack.c.b16 %v1112, %v1108
    %v1565 = vpack.c.b16 %v1113, %v1109
    %v1566 = vpack.c.b16 %v1118, %v1114
    %v1567 = vpack.c.b16 %v1119, %v1115
    %v1568 = vpack.c.b16 %v1120, %v1116
    %v1569 = vpack.c.b16 %v1121, %v1117
    %v1570 = vpack.c.b16 %v1126, %v1122
    %v1571 = vpack.c.b16 %v1127, %v1123
    %v1572 = vpack.c.b16 %v1128, %v1124
    %v1573 = vpack.c.b16 %v1129, %v1125
    %v1574 = vpack.c.b16 %v1134, %v1130
    %v1575 = vpack.c.b16 %v1135, %v1131
    %v1576 = vpack.c.b16 %v1136, %v1132
    %v1577 = vpack.c.b16 %v1137, %v1133
    %v1578 = vpack.c.b16 %v1142, %v1138
    %v1579 = vpack.c.b16 %v1143, %v1139
    %v1580 = vpack.c.b16 %v1144, %v1140
    %v1581 = vpack.c.b16 %v1145, %v1141
    %v1582 = vpack.c.b16 %v1150, %v1146
    %v1583 = vpack.c.b16 %v1151, %v1147
    %v1584 = vpack.c.b16 %v1152, %v1148
    %v1585 = vpack.c.b16 %v1153, %v1149
    %v1586 = vpack.c.b16 %v1158, %v1154
    %v1587 = vpack.c.b16 %v1159, %v1155
    %v1588 = vpack.c.b16 %v1160, %v1156
    %v1589 = vpack.c.b16 %v1161, %v1157
    %v1590 = vpack.c.b16 %v1166, %v1162
    %v1591 = vpack.c.b16 %v1167, %v1163
    %v1592 = vpack.c.b16 %v1168, %v1164
    %v1593 = vpack.c.b16 %v1169, %v1165
    %v1594 = vpack.c.b16 %v1174, %v1170
    %v1595 = vpack.c.b16 %v1175, %v1171
    %v1596 = vpack.c.b16 %v1176, %v1172
    %v1597 = vpack.c.b16 %v1177, %v1173
    %v1598 = vpack.c.b16 %v1182, %v1178
    %v1599 = vpack.c.b16 %v1183, %v1179
    %v1600 = vpack.c.b16 %v1184, %v1180
    %v1601 = vpack.c.b16 %v1185, %v1181
    %v1602 = vpack.c.b16 %v1190, %v1186
    %v1603 = vpack.c.b16 %v1191, %v1187
    %v1604 = vpack.c.b16 %v1192, %v1188
    %v1605 = vpack.c.b16 %v1193, %v1189
    %v1606 = vpack.c.b16 %v1198, %v1194
    %v1607 = vpack.c.b16 %v1199, %v1195
    %v1608 = vpack.c.b16 %v1200, %v1196
    %v1609 = vpack.c.b16 %v1201, %v1197
    %v1610 = vpack.c.b16 %v1206, %v1202
    %v1611 = vpack.c.b16 %v1207, %v1203
    %v1612 = vpack.c.b16 %v1208, %v1204
    %v1613 = vpack.c.b16 %v1209, %v1205
    %v1614 = vpack.c.b16 %v1214, %v1210
    %v1615 = vpack.c.b16 %v1215, %v1211
    %v1616 = vpack.c.b16 %v1216, %v1212
    %v1617 = vpack.c.b16 %v1217, %v1213
    %v1618 = vpack.c.b16 %v1222, %v1218
    %v1619 = vpack.c.b16 %v1223, %v1219
    %v1620 = vpack.c.b16 %v1224, %v1220
    %v1621 = vpack.c.b16 %v1225, %v1221
    %v1622 = vpack.c.b16 %v1230, %v1226
    %v1623 = vpack.c.b16 %v1231, %v1227
    %v1624 = vpack.c.b16 %v1232, %v1228
    %v1625 = vpack.c.b16 %v1233, %v1229
    %v1626 = vpack.c.b16 %v1238, %v1234
    %v1627 = vpack.c.b16 %v1239, %v1235
    %v1628 = vpack.c.b16 %v1240, %v1236
    %v1629 = vpack.c.b16 %v1241, %v1237
    %v1630 = vpack.c.b16 %v1246, %v1242
    %v1631 = vpack.c.b16 %v1247, %v1243
    %v1632 = vpack.c.b16 %v1248, %v1244
    %v1633 = vpack.c.b16 %v1249, %v1245
    %v1634 = vpack.c.b16 %v1254, %v1250
    %v1635 = vpack.c.b16 %v1255, %v1251
    %v1636 = vpack.c.b16 %v1256, %v1252
    %v1637 = vpack.c.b16 %v1257, %v1253
    %v1638 = vpack.c.b16 %v1262, %v1258
    %v1639 = vpack.c.b16 %v1263, %v1259
    %v1640 = vpack.c.b16 %v1264, %v1260
    %v1641 = vpack.c.b16 %v1265, %v1261
    %v1642 = vpack.c.b16 %v1270, %v1266
    %v1643 = vpack.c.b16 %v1271, %v1267
    %v1644 = vpack.c.b16 %v1272, %v1268
    %v1645 = vpack.c.b16 %v1273, %v1269
    %v1646 = vpack.c.b16 %v1278, %v1274
    %v1647 = vpack.c.b16 %v1279, %v1275
    %v1648 = vpack.c.b16 %v1280, %v1276
    %v1649 = vpack.c.b16 %v1281, %v1277
    %v1650 = vpack.c.b16 %v1286, %v1282
    %v1651 = vpack.c.b16 %v1287, %v1283
    %v1652 = vpack.c.b16 %v1288, %v1284
    %v1653 = vpack.c.b16 %v1289, %v1285
    %v1654 = vpack.c.b16 %v1294, %v1290
    %v1655 = vpack.c.b16 %v1295, %v1291
    %v1656 = vpack.c.b16 %v1296, %v1292
    %v1657 = vpack.c.b16 %v1297, %v1293
    %v1658 = vpack.c.b16 %v1302, %v1298
    %v1659 = vpack.c.b16 %v1303, %v1299
    %v1660 = vpack.c.b16 %v1304, %v1300
    %v1661 = vpack.c.b16 %v1305, %v1301
    %v1662 = vpack.c.b16 %v1310, %v1306
    %v1663 = vpack.c.b16 %v1311, %v1307
    %v1664 = vpack.c.b16 %v1312, %v1308
    %v1665 = vpack.c.b16 %v1313, %v1309
    %v1666 = vpack.c.b16 %v1318, %v1314
    %v1667 = vpack.c.b16 %v1319, %v1315
    %v1668 = vpack.c.b16 %v1320, %v1316
    %v1669 = vpack.c.b16 %v1321, %v1317
    %v1670 = vpack.c.b16 %v1326, %v1322
    %v1671 = vpack.c.b16 %v1327, %v1323
    %v1672 = vpack.c.b16 %v1328, %v1324
    %v1673 = vpack.c.b16 %v1329, %v1325
    %v1674 = vpack.c.b16 %v1334, %v1330
    %v1675 = vpack.c.b16 %v1335, %v1331
    %v1676 = vpack.c.b16 %v1336, %v1332
    %v1677 = vpack.c.b16 %v1337, %v1333
    %v1678 = vpack.c.b16 %v1342, %v1338
    %v1679 = vpack.c.b16 %v1343, %v1339
    %v1680 = vpack.c.b16 %v1344, %v1340
    %v1681 = vpack.c.b16 %v1345, %v1341
    %v1682 = vpack.c.b16 %v1350, %v1346
    %v1683 = vpack.c.b16 %v1351, %v1347
    %v1684 = vpack.c.b16 %v1352, %v1348
    %v1685 = vpack.c.b16 %v1353, %v1349
    %v1686 = vpack.c.b16 %v1358, %v1354
    %v1687 = vpack.c.b16 %v1359, %v1355
    %v1688 = vpack.c.b16 %v1360, %v1356
    %v1689 = vpack.c.b16 %v1361, %v1357
    %v1690 = vpack.c.b16 %v1366, %v1362
    %v1691 = vpack.c.b16 %v1367, %v1363
    %v1692 = vpack.c.b16 %v1368, %v1364
    %v1693 = vpack.c.b16 %v1369, %v1365
    %v1694 = vpack.c.b16 %v1374, %v1370
    %v1695 = vpack.c.b16 %v1375, %v1371
    %v1696 = vpack.c.b16 %v1376, %v1372
    %v1697 = vpack.c.b16 %v1377, %v1373
    %v1698 = vpack.c.b16 %v1382, %v1378
    %v1699 = vpack.c.b16 %v1383, %v1379
    %v1700 = vpack.c.b16 %v1384, %v1380
    %v1701 = vpack.c.b16 %v1385, %v1381
    %v1702 = vpack.c.b16 %v1390, %v1386
    %v1703 = vpack.c.b16 %v1391, %v1387
    %v1704 = vpack.c.b16 %v1392, %v1388
    %v1705 = vpack.c.b16 %v1393, %v1389
    %v1706 = vpack.c.b16 %v1398, %v1394
    %v1707 = vpack.c.b16 %v1399, %v1395
    %v1708 = vpack.c.b16 %v1400, %v1396
    %v1709 = vpack.c.b16 %v1401, %v1397
    %v1710 = vpack.c.b16 %v1406, %v1402
    %v1711 = vpack.c.b16 %v1407, %v1403
    %v1712 = vpack.c.b16 %v1408, %v1404
    %v1713 = vpack.c.b16 %v1409, %v1405
    %v1714 = vpack.c.b16 %v1414, %v1410
    %v1715 = vpack.c.b16 %v1415, %v1411
    %v1716 = vpack.c.b16 %v1416, %v1412
    %v1717 = vpack.c.b16 %v1417, %v1413
    %v1718 = vpack.c.b16 %v1422, %v1418
    %v1719 = vpack.c.b16 %v1423, %v1419
    %v1720 = vpack.c.b16 %v1424, %v1420
    %v1721 = vpack.c.b16 %v1425, %v1421
    %v1722 = vpack.c.b16 %v1430, %v1426
    %v1723 = vpack.c.b16 %v1431, %v1427
    %v1724 = vpack.c.b16 %v1432, %v1428
    %v1725 = vpack.c.b16 %v1433, %v1429
    %v1726 = vpack.c.b16 %v1438, %v1434
    %v1727 = vpack.c.b16 %v1439, %v1435
    %v1728 = vpack.c.b16 %v1440, %v1436
    %v1729 = vpack.c.b16 %v1441, %v1437
    %v1730 = vpack.c.b16 %v1446, %v1442
    %v1731 = vpack.c.b16 %v1447, %v1443
    %v1732 = vpack.c.b16 %v1448, %v1444
    %v1733 = vpack.c.b16 %v1449, %v1445
    %v1734 = vpack.c.b16 %v1454, %v1450
    %v1735 = vpack.c.b16 %v1455, %v1451
    %v1736 = vpack.c.b16 %v1456, %v1452
    %v1737 = vpack.c.b16 %v1457, %v1453
    %v1738 = vpack.c.b16 %v1462, %v1458
    %v1739 = vpack.c.b16 %v1463, %v1459
    %v1740 = vpack.c.b16 %v1464, %v1460
    %v1741 = vpack.c.b16 %v1465, %v1461
    %v1742 = vpack.c.b16 %v1470, %v1466
    %v1743 = vpack.c.b16 %v1471, %v1467
    %v1744 = vpack.c.b16 %v1472, %v1468
    %v1745 = vpack.c.b16 %v1473, %v1469
    %v1746 = vpack.c.b16 %v1478, %v1474
    %v1747 = vpack.c.b16 %v1479, %v1475
    %v1748 = vpack.c.b16 %v1480, %v1476
    %v1749 = vpack.c.b16 %v1481, %v1477
    %v1750 = vpack.c.b16 %v1486, %v1482
    %v1751 = vpack.c.b16 %v1487, %v1483
    %v1752 = vpack.c.b16 %v1488, %v1484
    %v1753 = vpack.c.b16 %v1489, %v1485
    %v1754 = vpack.c.b16 %v1494, %v1490
    %v1755 = vpack.c.b16 %v1495, %v1491
    %v1756 = vpack.c.b16 %v1496, %v1492
    %v1757 = vpack.c.b16 %v1497, %v1493
    %v1758 = vpack.c.b16 %v1502, %v1498
    %v1759 = vpack.c.b16 %v1503, %v1499
    %v1760 = vpack.c.b16 %v1504, %v1500
    %v1761 = vpack.c.b16 %v1505, %v1501
    %2018 = vmatpush.bf16.msra.mxu0 %v1534
    %2019 = vmatpush.bf16.msra.mxu0 %v1530
    %2020 = vmatpush.bf16.msra.mxu0 %v1526
    %2021 = vmatpush.bf16.msra.mxu0 %v1522
    %2022 = vmatpush.bf16.msra.mxu0 %v1518
    %2023 = vmatpush.bf16.msra.mxu0 %v1514
    %2024 = vmatpush.bf16.msra.mxu0 %v1510
    %2025 = vmatpush.bf16.msra.mxu0 %v1506
    %2026 = vmatmul.bf16.gmra.mxu0 %v464
    %v2027 = vpop.f32.mrf.mxu0
    %v2028 = vadd.f32 %v730, %v2027
    %v2029 = vpop.f32.mrf.mxu0
    %2030 = vdwg.mxu0
    %2031 = vmatpush.bf16.msra.mxu0 %v1566
    %2032 = vmatpush.bf16.msra.mxu0 %v1562
    %2033 = vmatpush.bf16.msra.mxu0 %v1558
    %2034 = vmatpush.bf16.msra.mxu0 %v1554
    %2035 = vmatpush.bf16.msra.mxu0 %v1550
    %2036 = vmatpush.bf16.msra.mxu0 %v1546
    %2037 = vmatpush.bf16.msra.mxu0 %v1542
    %2038 = vmatpush.bf16.msra.mxu0 %v1538
    %2039 = vmatmul.bf16.gmra.mxu0 %v465
    %v2040 = vpop.f32.mrf.mxu0
    %v2041 = vadd.f32 %v2028, %v2040
    %v2042 = vpop.f32.mrf.mxu0
    %2043 = vdwg.mxu0
    %2044 = vmatpush.bf16.msra.mxu0 %v1598
    %2045 = vmatpush.bf16.msra.mxu0 %v1594
    %2046 = vmatpush.bf16.msra.mxu0 %v1590
    %2047 = vmatpush.bf16.msra.mxu0 %v1586
    %2048 = vmatpush.bf16.msra.mxu0 %v1582
    %2049 = vmatpush.bf16.msra.mxu0 %v1578
    %2050 = vmatpush.bf16.msra.mxu0 %v1574
    %2051 = vmatpush.bf16.msra.mxu0 %v1570
    %2052 = vmatmul.bf16.gmra.mxu0 %v466
    %v2053 = vpop.f32.mrf.mxu0
    %v2054 = vadd.f32 %v2041, %v2053
    %v2055 = vpop.f32.mrf.mxu0
    %2056 = vdwg.mxu0
    %2057 = vmatpush.bf16.msra.mxu0 %v1630
    %2058 = vmatpush.bf16.msra.mxu0 %v1626
    %2059 = vmatpush.bf16.msra.mxu0 %v1622
    %2060 = vmatpush.bf16.msra.mxu0 %v1618
    %2061 = vmatpush.bf16.msra.mxu0 %v1614
    %2062 = vmatpush.bf16.msra.mxu0 %v1610
    %2063 = vmatpush.bf16.msra.mxu0 %v1606
    %2064 = vmatpush.bf16.msra.mxu0 %v1602
    %2065 = vmatmul.bf16.gmra.mxu0 %v467
    %v2066 = vpop.f32.mrf.mxu0
    %v2067 = vadd.f32 %v2054, %v2066
    %v2068 = vpop.f32.mrf.mxu0
    %2069 = vdwg.mxu0
    %2070 = vmatpush.bf16.msra.mxu0 %v1662
    %2071 = vmatpush.bf16.msra.mxu0 %v1658
    %2072 = vmatpush.bf16.msra.mxu0 %v1654
    %2073 = vmatpush.bf16.msra.mxu0 %v1650
    %2074 = vmatpush.bf16.msra.mxu0 %v1646
    %2075 = vmatpush.bf16.msra.mxu0 %v1642
    %2076 = vmatpush.bf16.msra.mxu0 %v1638
    %2077 = vmatpush.bf16.msra.mxu0 %v1634
    %2078 = vmatmul.bf16.gmra.mxu0 %v468
    %v2079 = vpop.f32.mrf.mxu0
    %v2080 = vadd.f32 %v2067, %v2079
    %v2081 = vpop.f32.mrf.mxu0
    %2082 = vdwg.mxu0
    %2083 = vmatpush.bf16.msra.mxu0 %v1694
    %2084 = vmatpush.bf16.msra.mxu0 %v1690
    %2085 = vmatpush.bf16.msra.mxu0 %v1686
    %2086 = vmatpush.bf16.msra.mxu0 %v1682
    %2087 = vmatpush.bf16.msra.mxu0 %v1678
    %2088 = vmatpush.bf16.msra.mxu0 %v1674
    %2089 = vmatpush.bf16.msra.mxu0 %v1670
    %2090 = vmatpush.bf16.msra.mxu0 %v1666
    %2091 = vmatmul.bf16.gmra.mxu0 %v469
    %v2092 = vpop.f32.mrf.mxu0
    %v2093 = vadd.f32 %v2080, %v2092
    %v2094 = vpop.f32.mrf.mxu0
    %2095 = vdwg.mxu0
    %2096 = vmatpush.bf16.msra.mxu0 %v1726
    %2097 = vmatpush.bf16.msra.mxu0 %v1722
    %2098 = vmatpush.bf16.msra.mxu0 %v1718
    %2099 = vmatpush.bf16.msra.mxu0 %v1714
    %2100 = vmatpush.bf16.msra.mxu0 %v1710
    %2101 = vmatpush.bf16.msra.mxu0 %v1706
    %2102 = vmatpush.bf16.msra.mxu0 %v1702
    %2103 = vmatpush.bf16.msra.mxu0 %v1698
    %2104 = vmatmul.bf16.gmra.mxu0 %v470
    %v2105 = vpop.f32.mrf.mxu0
    %v2106 = vadd.f32 %v2093, %v2105
    %v2107 = vpop.f32.mrf.mxu0
    %2108 = vdwg.mxu0
    %2109 = vmatpush.bf16.msra.mxu0 %v1758
    %2110 = vmatpush.bf16.msra.mxu0 %v1754
    %2111 = vmatpush.bf16.msra.mxu0 %v1750
    %2112 = vmatpush.bf16.msra.mxu0 %v1746
    %2113 = vmatpush.bf16.msra.mxu0 %v1742
    %2114 = vmatpush.bf16.msra.mxu0 %v1738
    %2115 = vmatpush.bf16.msra.mxu0 %v1734
    %2116 = vmatpush.bf16.msra.mxu0 %v1730
    %2117 = vmatmul.bf16.gmra.mxu0 %v471
    %v2118 = vpop.f32.mrf.mxu0
    %v2119 = vadd.f32 %v2106, %v2118
    %v2120 = vpop.f32.mrf.mxu0
    %2121 = vdwg.mxu0
    %2122 = vmatpush.bf16.msra.mxu0 %v1535
    %2123 = vmatpush.bf16.msra.mxu0 %v1531
    %2124 = vmatpush.bf16.msra.mxu0 %v1527
    %2125 = vmatpush.bf16.msra.mxu0 %v1523
    %2126 = vmatpush.bf16.msra.mxu0 %v1519
    %2127 = vmatpush.bf16.msra.mxu0 %v1515
    %2128 = vmatpush.bf16.msra.mxu0 %v1511
    %2129 = vmatpush.bf16.msra.mxu0 %v1507
    %2130 = vmatmul.bf16.gmra.mxu0 %v464
    %v2131 = vpop.f32.mrf.mxu0
    %v2132 = vadd.f32 %v731, %v2131
    %v2133 = vpop.f32.mrf.mxu0
    %2134 = vdwg.mxu0
    %2135 = vmatpush.bf16.msra.mxu0 %v1567
    %2136 = vmatpush.bf16.msra.mxu0 %v1563
    %2137 = vmatpush.bf16.msra.mxu0 %v1559
    %2138 = vmatpush.bf16.msra.mxu0 %v1555
    %2139 = vmatpush.bf16.msra.mxu0 %v1551
    %2140 = vmatpush.bf16.msra.mxu0 %v1547
    %2141 = vmatpush.bf16.msra.mxu0 %v1543
    %2142 = vmatpush.bf16.msra.mxu0 %v1539
    %2143 = vmatmul.bf16.gmra.mxu0 %v465
    %v2144 = vpop.f32.mrf.mxu0
    %v2145 = vadd.f32 %v2132, %v2144
    %v2146 = vpop.f32.mrf.mxu0
    %2147 = vdwg.mxu0
    %2148 = vmatpush.bf16.msra.mxu0 %v1599
    %2149 = vmatpush.bf16.msra.mxu0 %v1595
    %2150 = vmatpush.bf16.msra.mxu0 %v1591
    %2151 = vmatpush.bf16.msra.mxu0 %v1587
    %2152 = vmatpush.bf16.msra.mxu0 %v1583
    %2153 = vmatpush.bf16.msra.mxu0 %v1579
    %2154 = vmatpush.bf16.msra.mxu0 %v1575
    %2155 = vmatpush.bf16.msra.mxu0 %v1571
    %2156 = vmatmul.bf16.gmra.mxu0 %v466
    %v2157 = vpop.f32.mrf.mxu0
    %v2158 = vadd.f32 %v2145, %v2157
    %v2159 = vpop.f32.mrf.mxu0
    %2160 = vdwg.mxu0
    %2161 = vmatpush.bf16.msra.mxu0 %v1631
    %2162 = vmatpush.bf16.msra.mxu0 %v1627
    %2163 = vmatpush.bf16.msra.mxu0 %v1623
    %2164 = vmatpush.bf16.msra.mxu0 %v1619
    %2165 = vmatpush.bf16.msra.mxu0 %v1615
    %2166 = vmatpush.bf16.msra.mxu0 %v1611
    %2167 = vmatpush.bf16.msra.mxu0 %v1607
    %2168 = vmatpush.bf16.msra.mxu0 %v1603
    %2169 = vmatmul.bf16.gmra.mxu0 %v467
    %v2170 = vpop.f32.mrf.mxu0
    %v2171 = vadd.f32 %v2158, %v2170
    %v2172 = vpop.f32.mrf.mxu0
    %2173 = vdwg.mxu0
    %2174 = vmatpush.bf16.msra.mxu0 %v1663
    %2175 = vmatpush.bf16.msra.mxu0 %v1659
    %2176 = vmatpush.bf16.msra.mxu0 %v1655
    %2177 = vmatpush.bf16.msra.mxu0 %v1651
    %2178 = vmatpush.bf16.msra.mxu0 %v1647
    %2179 = vmatpush.bf16.msra.mxu0 %v1643
    %2180 = vmatpush.bf16.msra.mxu0 %v1639
    %2181 = vmatpush.bf16.msra.mxu0 %v1635
    %2182 = vmatmul.bf16.gmra.mxu0 %v468
    %v2183 = vpop.f32.mrf.mxu0
    %v2184 = vadd.f32 %v2171, %v2183
    %v2185 = vpop.f32.mrf.mxu0
    %2186 = vdwg.mxu0
    %2187 = vmatpush.bf16.msra.mxu0 %v1695
    %2188 = vmatpush.bf16.msra.mxu0 %v1691
    %2189 = vmatpush.bf16.msra.mxu0 %v1687
    %2190 = vmatpush.bf16.msra.mxu0 %v1683
    %2191 = vmatpush.bf16.msra.mxu0 %v1679
    %2192 = vmatpush.bf16.msra.mxu0 %v1675
    %2193 = vmatpush.bf16.msra.mxu0 %v1671
    %2194 = vmatpush.bf16.msra.mxu0 %v1667
    %2195 = vmatmul.bf16.gmra.mxu0 %v469
    %v2196 = vpop.f32.mrf.mxu0
    %v2197 = vadd.f32 %v2184, %v2196
    %v2198 = vpop.f32.mrf.mxu0
    %2199 = vdwg.mxu0
    %2200 = vmatpush.bf16.msra.mxu0 %v1727
    %2201 = vmatpush.bf16.msra.mxu0 %v1723
    %2202 = vmatpush.bf16.msra.mxu0 %v1719
    %2203 = vmatpush.bf16.msra.mxu0 %v1715
    %2204 = vmatpush.bf16.msra.mxu0 %v1711
    %2205 = vmatpush.bf16.msra.mxu0 %v1707
    %2206 = vmatpush.bf16.msra.mxu0 %v1703
    %2207 = vmatpush.bf16.msra.mxu0 %v1699
    %2208 = vmatmul.bf16.gmra.mxu0 %v470
    %v2209 = vpop.f32.mrf.mxu0
    %v2210 = vadd.f32 %v2197, %v2209
    %v2211 = vpop.f32.mrf.mxu0
    %2212 = vdwg.mxu0
    %2213 = vmatpush.bf16.msra.mxu0 %v1759
    %2214 = vmatpush.bf16.msra.mxu0 %v1755
    %2215 = vmatpush.bf16.msra.mxu0 %v1751
    %2216 = vmatpush.bf16.msra.mxu0 %v1747
    %2217 = vmatpush.bf16.msra.mxu0 %v1743
    %2218 = vmatpush.bf16.msra.mxu0 %v1739
    %2219 = vmatpush.bf16.msra.mxu0 %v1735
    %2220 = vmatpush.bf16.msra.mxu0 %v1731
    %2221 = vmatmul.bf16.gmra.mxu0 %v471
    %v2222 = vpop.f32.mrf.mxu0
    %v2223 = vadd.f32 %v2210, %v2222
    %v2224 = vpop.f32.mrf.mxu0
    %2225 = vdwg.mxu0
    %2226 = vmatpush.bf16.msra.mxu0 %v1536
    %2227 = vmatpush.bf16.msra.mxu0 %v1532
    %2228 = vmatpush.bf16.msra.mxu0 %v1528
    %2229 = vmatpush.bf16.msra.mxu0 %v1524
    %2230 = vmatpush.bf16.msra.mxu0 %v1520
    %2231 = vmatpush.bf16.msra.mxu0 %v1516
    %2232 = vmatpush.bf16.msra.mxu0 %v1512
    %2233 = vmatpush.bf16.msra.mxu0 %v1508
    %2234 = vmatmul.bf16.gmra.mxu0 %v464
    %v2235 = vpop.f32.mrf.mxu0
    %v2236 = vadd.f32 %v732, %v2235
    %v2237 = vpop.f32.mrf.mxu0
    %2238 = vdwg.mxu0
    %2239 = vmatpush.bf16.msra.mxu0 %v1568
    %2240 = vmatpush.bf16.msra.mxu0 %v1564
    %2241 = vmatpush.bf16.msra.mxu0 %v1560
    %2242 = vmatpush.bf16.msra.mxu0 %v1556
    %2243 = vmatpush.bf16.msra.mxu0 %v1552
    %2244 = vmatpush.bf16.msra.mxu0 %v1548
    %2245 = vmatpush.bf16.msra.mxu0 %v1544
    %2246 = vmatpush.bf16.msra.mxu0 %v1540
    %2247 = vmatmul.bf16.gmra.mxu0 %v465
    %v2248 = vpop.f32.mrf.mxu0
    %v2249 = vadd.f32 %v2236, %v2248
    %v2250 = vpop.f32.mrf.mxu0
    %2251 = vdwg.mxu0
    %2252 = vmatpush.bf16.msra.mxu0 %v1600
    %2253 = vmatpush.bf16.msra.mxu0 %v1596
    %2254 = vmatpush.bf16.msra.mxu0 %v1592
    %2255 = vmatpush.bf16.msra.mxu0 %v1588
    %2256 = vmatpush.bf16.msra.mxu0 %v1584
    %2257 = vmatpush.bf16.msra.mxu0 %v1580
    %2258 = vmatpush.bf16.msra.mxu0 %v1576
    %2259 = vmatpush.bf16.msra.mxu0 %v1572
    %2260 = vmatmul.bf16.gmra.mxu0 %v466
    %v2261 = vpop.f32.mrf.mxu0
    %v2262 = vadd.f32 %v2249, %v2261
    %v2263 = vpop.f32.mrf.mxu0
    %2264 = vdwg.mxu0
    %2265 = vmatpush.bf16.msra.mxu0 %v1632
    %2266 = vmatpush.bf16.msra.mxu0 %v1628
    %2267 = vmatpush.bf16.msra.mxu0 %v1624
    %2268 = vmatpush.bf16.msra.mxu0 %v1620
    %2269 = vmatpush.bf16.msra.mxu0 %v1616
    %2270 = vmatpush.bf16.msra.mxu0 %v1612
    %2271 = vmatpush.bf16.msra.mxu0 %v1608
    %2272 = vmatpush.bf16.msra.mxu0 %v1604
    %2273 = vmatmul.bf16.gmra.mxu0 %v467
    %v2274 = vpop.f32.mrf.mxu0
    %v2275 = vadd.f32 %v2262, %v2274
    %v2276 = vpop.f32.mrf.mxu0
    %2277 = vdwg.mxu0
    %2278 = vmatpush.bf16.msra.mxu0 %v1664
    %2279 = vmatpush.bf16.msra.mxu0 %v1660
    %2280 = vmatpush.bf16.msra.mxu0 %v1656
    %2281 = vmatpush.bf16.msra.mxu0 %v1652
    %2282 = vmatpush.bf16.msra.mxu0 %v1648
    %2283 = vmatpush.bf16.msra.mxu0 %v1644
    %2284 = vmatpush.bf16.msra.mxu0 %v1640
    %2285 = vmatpush.bf16.msra.mxu0 %v1636
    %2286 = vmatmul.bf16.gmra.mxu0 %v468
    %v2287 = vpop.f32.mrf.mxu0
    %v2288 = vadd.f32 %v2275, %v2287
    %v2289 = vpop.f32.mrf.mxu0
    %2290 = vdwg.mxu0
    %2291 = vmatpush.bf16.msra.mxu0 %v1696
    %2292 = vmatpush.bf16.msra.mxu0 %v1692
    %2293 = vmatpush.bf16.msra.mxu0 %v1688
    %2294 = vmatpush.bf16.msra.mxu0 %v1684
    %2295 = vmatpush.bf16.msra.mxu0 %v1680
    %2296 = vmatpush.bf16.msra.mxu0 %v1676
    %2297 = vmatpush.bf16.msra.mxu0 %v1672
    %2298 = vmatpush.bf16.msra.mxu0 %v1668
    %2299 = vmatmul.bf16.gmra.mxu0 %v469
    %v2300 = vpop.f32.mrf.mxu0
    %v2301 = vadd.f32 %v2288, %v2300
    %v2302 = vpop.f32.mrf.mxu0
    %2303 = vdwg.mxu0
    %2304 = vmatpush.bf16.msra.mxu0 %v1728
    %2305 = vmatpush.bf16.msra.mxu0 %v1724
    %2306 = vmatpush.bf16.msra.mxu0 %v1720
    %2307 = vmatpush.bf16.msra.mxu0 %v1716
    %2308 = vmatpush.bf16.msra.mxu0 %v1712
    %2309 = vmatpush.bf16.msra.mxu0 %v1708
    %2310 = vmatpush.bf16.msra.mxu0 %v1704
    %2311 = vmatpush.bf16.msra.mxu0 %v1700
    %2312 = vmatmul.bf16.gmra.mxu0 %v470
    %v2313 = vpop.f32.mrf.mxu0
    %v2314 = vadd.f32 %v2301, %v2313
    %v2315 = vpop.f32.mrf.mxu0
    %2316 = vdwg.mxu0
    %2317 = vmatpush.bf16.msra.mxu0 %v1760
    %2318 = vmatpush.bf16.msra.mxu0 %v1756
    %2319 = vmatpush.bf16.msra.mxu0 %v1752
    %2320 = vmatpush.bf16.msra.mxu0 %v1748
    %2321 = vmatpush.bf16.msra.mxu0 %v1744
    %2322 = vmatpush.bf16.msra.mxu0 %v1740
    %2323 = vmatpush.bf16.msra.mxu0 %v1736
    %2324 = vmatpush.bf16.msra.mxu0 %v1732
    %2325 = vmatmul.bf16.gmra.mxu0 %v471
    %v2326 = vpop.f32.mrf.mxu0
    %v2327 = vadd.f32 %v2314, %v2326
    %v2328 = vpop.f32.mrf.mxu0
    %2329 = vdwg.mxu0
    %2330 = vmatpush.bf16.msra.mxu0 %v1537
    %2331 = vmatpush.bf16.msra.mxu0 %v1533
    %2332 = vmatpush.bf16.msra.mxu0 %v1529
    %2333 = vmatpush.bf16.msra.mxu0 %v1525
    %2334 = vmatpush.bf16.msra.mxu0 %v1521
    %2335 = vmatpush.bf16.msra.mxu0 %v1517
    %2336 = vmatpush.bf16.msra.mxu0 %v1513
    %2337 = vmatpush.bf16.msra.mxu0 %v1509
    %2338 = vmatmul.bf16.gmra.mxu0 %v464
    %v2339 = vpop.f32.mrf.mxu0
    %v2340 = vadd.f32 %v733, %v2339
    %v2341 = vpop.f32.mrf.mxu0
    %2342 = vdwg.mxu0
    %2343 = vmatpush.bf16.msra.mxu0 %v1569
    %2344 = vmatpush.bf16.msra.mxu0 %v1565
    %2345 = vmatpush.bf16.msra.mxu0 %v1561
    %2346 = vmatpush.bf16.msra.mxu0 %v1557
    %2347 = vmatpush.bf16.msra.mxu0 %v1553
    %2348 = vmatpush.bf16.msra.mxu0 %v1549
    %2349 = vmatpush.bf16.msra.mxu0 %v1545
    %2350 = vmatpush.bf16.msra.mxu0 %v1541
    %2351 = vmatmul.bf16.gmra.mxu0 %v465
    %v2352 = vpop.f32.mrf.mxu0
    %v2353 = vadd.f32 %v2340, %v2352
    %v2354 = vpop.f32.mrf.mxu0
    %2355 = vdwg.mxu0
    %2356 = vmatpush.bf16.msra.mxu0 %v1601
    %2357 = vmatpush.bf16.msra.mxu0 %v1597
    %2358 = vmatpush.bf16.msra.mxu0 %v1593
    %2359 = vmatpush.bf16.msra.mxu0 %v1589
    %2360 = vmatpush.bf16.msra.mxu0 %v1585
    %2361 = vmatpush.bf16.msra.mxu0 %v1581
    %2362 = vmatpush.bf16.msra.mxu0 %v1577
    %2363 = vmatpush.bf16.msra.mxu0 %v1573
    %2364 = vmatmul.bf16.gmra.mxu0 %v466
    %v2365 = vpop.f32.mrf.mxu0
    %v2366 = vadd.f32 %v2353, %v2365
    %v2367 = vpop.f32.mrf.mxu0
    %2368 = vdwg.mxu0
    %2369 = vmatpush.bf16.msra.mxu0 %v1633
    %2370 = vmatpush.bf16.msra.mxu0 %v1629
    %2371 = vmatpush.bf16.msra.mxu0 %v1625
    %2372 = vmatpush.bf16.msra.mxu0 %v1621
    %2373 = vmatpush.bf16.msra.mxu0 %v1617
    %2374 = vmatpush.bf16.msra.mxu0 %v1613
    %2375 = vmatpush.bf16.msra.mxu0 %v1609
    %2376 = vmatpush.bf16.msra.mxu0 %v1605
    %2377 = vmatmul.bf16.gmra.mxu0 %v467
    %v2378 = vpop.f32.mrf.mxu0
    %v2379 = vadd.f32 %v2366, %v2378
    %v2380 = vpop.f32.mrf.mxu0
    %2381 = vdwg.mxu0
    %2382 = vmatpush.bf16.msra.mxu0 %v1665
    %2383 = vmatpush.bf16.msra.mxu0 %v1661
    %2384 = vmatpush.bf16.msra.mxu0 %v1657
    %2385 = vmatpush.bf16.msra.mxu0 %v1653
    %2386 = vmatpush.bf16.msra.mxu0 %v1649
    %2387 = vmatpush.bf16.msra.mxu0 %v1645
    %2388 = vmatpush.bf16.msra.mxu0 %v1641
    %2389 = vmatpush.bf16.msra.mxu0 %v1637
    %2390 = vmatmul.bf16.gmra.mxu0 %v468
    %v2391 = vpop.f32.mrf.mxu0
    %v2392 = vadd.f32 %v2379, %v2391
    %v2393 = vpop.f32.mrf.mxu0
    %2394 = vdwg.mxu0
    %2395 = vmatpush.bf16.msra.mxu0 %v1697
    %2396 = vmatpush.bf16.msra.mxu0 %v1693
    %2397 = vmatpush.bf16.msra.mxu0 %v1689
    %2398 = vmatpush.bf16.msra.mxu0 %v1685
    %2399 = vmatpush.bf16.msra.mxu0 %v1681
    %2400 = vmatpush.bf16.msra.mxu0 %v1677
    %2401 = vmatpush.bf16.msra.mxu0 %v1673
    %2402 = vmatpush.bf16.msra.mxu0 %v1669
    %2403 = vmatmul.bf16.gmra.mxu0 %v469
    %v2404 = vpop.f32.mrf.mxu0
    %v2405 = vadd.f32 %v2392, %v2404
    %v2406 = vpop.f32.mrf.mxu0
    %2407 = vdwg.mxu0
    %2408 = vmatpush.bf16.msra.mxu0 %v1729
    %2409 = vmatpush.bf16.msra.mxu0 %v1725
    %2410 = vmatpush.bf16.msra.mxu0 %v1721
    %2411 = vmatpush.bf16.msra.mxu0 %v1717
    %2412 = vmatpush.bf16.msra.mxu0 %v1713
    %2413 = vmatpush.bf16.msra.mxu0 %v1709
    %2414 = vmatpush.bf16.msra.mxu0 %v1705
    %2415 = vmatpush.bf16.msra.mxu0 %v1701
    %2416 = vmatmul.bf16.gmra.mxu0 %v470
    %v2417 = vpop.f32.mrf.mxu0
    %v2418 = vadd.f32 %v2405, %v2417
    %v2419 = vpop.f32.mrf.mxu0
    %2420 = vdwg.mxu0
    %2421 = vmatpush.bf16.msra.mxu0 %v1761
    %2422 = vmatpush.bf16.msra.mxu0 %v1757
    %2423 = vmatpush.bf16.msra.mxu0 %v1753
    %2424 = vmatpush.bf16.msra.mxu0 %v1749
    %2425 = vmatpush.bf16.msra.mxu0 %v1745
    %2426 = vmatpush.bf16.msra.mxu0 %v1741
    %2427 = vmatpush.bf16.msra.mxu0 %v1737
    %2428 = vmatpush.bf16.msra.mxu0 %v1733
    %2429 = vmatmul.bf16.gmra.mxu0 %v471
    %v2430 = vpop.f32.mrf.mxu0
    %v2431 = vadd.f32 %v2418, %v2430
    %v2432 = vpop.f32.mrf.mxu0
    %2433 = vdwg.mxu0
    %v2434 = vmax.f32 %v2119, 0.0
    %v2435 = vmax.f32 %v2223, 0.0
    %v2436 = vmax.f32 %v2327, 0.0
    %v2437 = vmax.f32 %v2431, 0.0
    %v2438 = vpack.c.bf16 %v2434, %v2434
    %v2439 = vpack.c.bf16 %v2435, %v2435
    %v2440 = vpack.c.bf16 %v2436, %v2436
    %v2441 = vpack.c.bf16 %v2437, %v2437
    %v2442 = vld [vmem:[#allocation10] sm:$0xff]
    %v2443 = vld [vmem:[#allocation10 + $0x8] sm:$0xff]
    %v2444 = vld [vmem:[#allocation10 + $0x10] sm:$0xff]
    %v2445 = vld [vmem:[#allocation10 + $0x18] sm:$0xff]
    %v2446 = vld [vmem:[#allocation10 + $0x20] sm:$0xff]
    %v2447 = vld [vmem:[#allocation10 + $0x28] sm:$0xff]
    %v2448 = vld [vmem:[#allocation10 + $0x30] sm:$0xff]
    %v2449 = vld [vmem:[#allocation10 + $0x38] sm:$0xff]
    %v2450 = vld [vmem:[#allocation10 + $0x40] sm:$0xff]
    %v2451 = vld [vmem:[#allocation10 + $0x48] sm:$0xff]
    %v2452 = vld [vmem:[#allocation10 + $0x50] sm:$0xff]
    %v2453 = vld [vmem:[#allocation10 + $0x58] sm:$0xff]
    %v2454 = vld [vmem:[#allocation10 + $0x60] sm:$0xff]
    %v2455 = vld [vmem:[#allocation10 + $0x68] sm:$0xff]
    %v2456 = vld [vmem:[#allocation10 + $0x70] sm:$0xff]
    %v2457 = vld [vmem:[#allocation10 + $0x78] sm:$0xff]
    %v2458 = vld [vmem:[#allocation10 + $0x80] sm:$0xff]
    %v2459 = vld [vmem:[#allocation10 + $0x88] sm:$0xff]
    %v2460 = vld [vmem:[#allocation10 + $0x90] sm:$0xff]
    %v2461 = vld [vmem:[#allocation10 + $0x98] sm:$0xff]
    %v2462 = vld [vmem:[#allocation10 + $0xa0] sm:$0xff]
    %v2463 = vld [vmem:[#allocation10 + $0xa8] sm:$0xff]
    %v2464 = vld [vmem:[#allocation10 + $0xb0] sm:$0xff]
    %v2465 = vld [vmem:[#allocation10 + $0xb8] sm:$0xff]
    %v2466 = vld [vmem:[#allocation10 + $0xc0] sm:$0xff]
    %v2467 = vld [vmem:[#allocation10 + $0xc8] sm:$0xff]
    %v2468 = vld [vmem:[#allocation10 + $0xd0] sm:$0xff]
    %v2469 = vld [vmem:[#allocation10 + $0xd8] sm:$0xff]
    %v2470 = vld [vmem:[#allocation10 + $0xe0] sm:$0xff]
    %v2471 = vld [vmem:[#allocation10 + $0xe8] sm:$0xff]
    %v2472 = vld [vmem:[#allocation10 + $0xf0] sm:$0xff]
    %v2473 = vld [vmem:[#allocation10 + $0xf8] sm:$0xff]
    %v2474 = vld [vmem:[#allocation10 + $0x100] sm:$0xff]
    %v2475 = vld [vmem:[#allocation10 + $0x108] sm:$0xff]
    %v2476 = vld [vmem:[#allocation10 + $0x110] sm:$0xff]
    %v2477 = vld [vmem:[#allocation10 + $0x118] sm:$0xff]
    %v2478 = vld [vmem:[#allocation10 + $0x120] sm:$0xff]
    %v2479 = vld [vmem:[#allocation10 + $0x128] sm:$0xff]
    %v2480 = vld [vmem:[#allocation10 + $0x130] sm:$0xff]
    %v2481 = vld [vmem:[#allocation10 + $0x138] sm:$0xff]
    %v2482 = vld [vmem:[#allocation10 + $0x140] sm:$0xff]
    %v2483 = vld [vmem:[#allocation10 + $0x148] sm:$0xff]
    %v2484 = vld [vmem:[#allocation10 + $0x150] sm:$0xff]
    %v2485 = vld [vmem:[#allocation10 + $0x158] sm:$0xff]
    %v2486 = vld [vmem:[#allocation10 + $0x160] sm:$0xff]
    %v2487 = vld [vmem:[#allocation10 + $0x168] sm:$0xff]
    %v2488 = vld [vmem:[#allocation10 + $0x170] sm:$0xff]
    %v2489 = vld [vmem:[#allocation10 + $0x178] sm:$0xff]
    %v2490 = vld [vmem:[#allocation10 + $0x180] sm:$0xff]
    %v2491 = vld [vmem:[#allocation10 + $0x188] sm:$0xff]
    %v2492 = vld [vmem:[#allocation10 + $0x190] sm:$0xff]
    %v2493 = vld [vmem:[#allocation10 + $0x198] sm:$0xff]
    %v2494 = vld [vmem:[#allocation10 + $0x1a0] sm:$0xff]
    %v2495 = vld [vmem:[#allocation10 + $0x1a8] sm:$0xff]
    %v2496 = vld [vmem:[#allocation10 + $0x1b0] sm:$0xff]
    %v2497 = vld [vmem:[#allocation10 + $0x1b8] sm:$0xff]
    %v2498 = vld [vmem:[#allocation10 + $0x1c0] sm:$0xff]
    %v2499 = vld [vmem:[#allocation10 + $0x1c8] sm:$0xff]
    %v2500 = vld [vmem:[#allocation10 + $0x1d0] sm:$0xff]
    %v2501 = vld [vmem:[#allocation10 + $0x1d8] sm:$0xff]
    %v2502 = vld [vmem:[#allocation10 + $0x1e0] sm:$0xff]
    %v2503 = vld [vmem:[#allocation10 + $0x1e8] sm:$0xff]
    %v2504 = vld [vmem:[#allocation10 + $0x1f0] sm:$0xff]
    %v2505 = vld [vmem:[#allocation10 + $0x1f8] sm:$0xff]
    %v2506 = vld [vmem:[%s6] sm:$0x3]
    %v2508 = vperm.slane %v2506, 0
    %v2509 = vperm.slane %v2506, 1
    %v2576 = vunpack.c.l.b16 %v2442
    %v2577 = vunpack.c.h.b16 %v2442
    %v2578 = vunpack.c.l.b16 %v2443
    %v2579 = vunpack.c.h.b16 %v2443
    %v2580 = vunpack.c.l.b16 %v2444
    %v2581 = vunpack.c.h.b16 %v2444
    %v2582 = vunpack.c.l.b16 %v2445
    %v2583 = vunpack.c.h.b16 %v2445
    %v2584 = vunpack.c.l.b16 %v2446
    %v2585 = vunpack.c.h.b16 %v2446
    %v2586 = vunpack.c.l.b16 %v2447
    %v2587 = vunpack.c.h.b16 %v2447
    %v2588 = vunpack.c.l.b16 %v2448
    %v2589 = vunpack.c.h.b16 %v2448
    %v2590 = vunpack.c.l.b16 %v2449
    %v2591 = vunpack.c.h.b16 %v2449
    %v2592 = vunpack.c.l.b16 %v2450
    %v2593 = vunpack.c.h.b16 %v2450
    %v2594 = vunpack.c.l.b16 %v2451
    %v2595 = vunpack.c.h.b16 %v2451
    %v2596 = vunpack.c.l.b16 %v2452
    %v2597 = vunpack.c.h.b16 %v2452
    %v2598 = vunpack.c.l.b16 %v2453
    %v2599 = vunpack.c.h.b16 %v2453
    %v2600 = vunpack.c.l.b16 %v2454
    %v2601 = vunpack.c.h.b16 %v2454
    %v2602 = vunpack.c.l.b16 %v2455
    %v2603 = vunpack.c.h.b16 %v2455
    %v2604 = vunpack.c.l.b16 %v2456
    %v2605 = vunpack.c.h.b16 %v2456
    %v2606 = vunpack.c.l.b16 %v2457
    %v2607 = vunpack.c.h.b16 %v2457
    %v2608 = vunpack.c.l.b16 %v2458
    %v2609 = vunpack.c.h.b16 %v2458
    %v2610 = vunpack.c.l.b16 %v2459
    %v2611 = vunpack.c.h.b16 %v2459
    %v2612 = vunpack.c.l.b16 %v2460
    %v2613 = vunpack.c.h.b16 %v2460
    %v2614 = vunpack.c.l.b16 %v2461
    %v2615 = vunpack.c.h.b16 %v2461
    %v2616 = vunpack.c.l.b16 %v2462
    %v2617 = vunpack.c.h.b16 %v2462
    %v2618 = vunpack.c.l.b16 %v2463
    %v2619 = vunpack.c.h.b16 %v2463
    %v2620 = vunpack.c.l.b16 %v2464
    %v2621 = vunpack.c.h.b16 %v2464
    %v2622 = vunpack.c.l.b16 %v2465
    %v2623 = vunpack.c.h.b16 %v2465
    %v2624 = vunpack.c.l.b16 %v2466
    %v2625 = vunpack.c.h.b16 %v2466
    %v2626 = vunpack.c.l.b16 %v2467
    %v2627 = vunpack.c.h.b16 %v2467
    %v2628 = vunpack.c.l.b16 %v2468
    %v2629 = vunpack.c.h.b16 %v2468
    %v2630 = vunpack.c.l.b16 %v2469
    %v2631 = vunpack.c.h.b16 %v2469
    %v2632 = vunpack.c.l.b16 %v2470
    %v2633 = vunpack.c.h.b16 %v2470
    %v2634 = vunpack.c.l.b16 %v2471
    %v2635 = vunpack.c.h.b16 %v2471
    %v2636 = vunpack.c.l.b16 %v2472
    %v2637 = vunpack.c.h.b16 %v2472
    %v2638 = vunpack.c.l.b16 %v2473
    %v2639 = vunpack.c.h.b16 %v2473
    %v2640 = vunpack.c.l.b16 %v2474
    %v2641 = vunpack.c.h.b16 %v2474
    %v2642 = vunpack.c.l.b16 %v2475
    %v2643 = vunpack.c.h.b16 %v2475
    %v2644 = vunpack.c.l.b16 %v2476
    %v2645 = vunpack.c.h.b16 %v2476
    %v2646 = vunpack.c.l.b16 %v2477
    %v2647 = vunpack.c.h.b16 %v2477
    %v2648 = vunpack.c.l.b16 %v2478
    %v2649 = vunpack.c.h.b16 %v2478
    %v2650 = vunpack.c.l.b16 %v2479
    %v2651 = vunpack.c.h.b16 %v2479
    %v2652 = vunpack.c.l.b16 %v2480
    %v2653 = vunpack.c.h.b16 %v2480
    %v2654 = vunpack.c.l.b16 %v2481
    %v2655 = vunpack.c.h.b16 %v2481
    %v2656 = vunpack.c.l.b16 %v2482
    %v2657 = vunpack.c.h.b16 %v2482
    %v2658 = vunpack.c.l.b16 %v2483
    %v2659 = vunpack.c.h.b16 %v2483
    %v2660 = vunpack.c.l.b16 %v2484
    %v2661 = vunpack.c.h.b16 %v2484
    %v2662 = vunpack.c.l.b16 %v2485
    %v2663 = vunpack.c.h.b16 %v2485
    %v2664 = vunpack.c.l.b16 %v2486
    %v2665 = vunpack.c.h.b16 %v2486
    %v2666 = vunpack.c.l.b16 %v2487
    %v2667 = vunpack.c.h.b16 %v2487
    %v2668 = vunpack.c.l.b16 %v2488
    %v2669 = vunpack.c.h.b16 %v2488
    %v2670 = vunpack.c.l.b16 %v2489
    %v2671 = vunpack.c.h.b16 %v2489
    %v2672 = vunpack.c.l.b16 %v2490
    %v2673 = vunpack.c.h.b16 %v2490
    %v2674 = vunpack.c.l.b16 %v2491
    %v2675 = vunpack.c.h.b16 %v2491
    %v2676 = vunpack.c.l.b16 %v2492
    %v2677 = vunpack.c.h.b16 %v2492
    %v2678 = vunpack.c.l.b16 %v2493
    %v2679 = vunpack.c.h.b16 %v2493
    %v2680 = vunpack.c.l.b16 %v2494
    %v2681 = vunpack.c.h.b16 %v2494
    %v2682 = vunpack.c.l.b16 %v2495
    %v2683 = vunpack.c.h.b16 %v2495
    %v2684 = vunpack.c.l.b16 %v2496
    %v2685 = vunpack.c.h.b16 %v2496
    %v2686 = vunpack.c.l.b16 %v2497
    %v2687 = vunpack.c.h.b16 %v2497
    %v2688 = vunpack.c.l.b16 %v2498
    %v2689 = vunpack.c.h.b16 %v2498
    %v2690 = vunpack.c.l.b16 %v2499
    %v2691 = vunpack.c.h.b16 %v2499
    %v2692 = vunpack.c.l.b16 %v2500
    %v2693 = vunpack.c.h.b16 %v2500
    %v2694 = vunpack.c.l.b16 %v2501
    %v2695 = vunpack.c.h.b16 %v2501
    %v2696 = vunpack.c.l.b16 %v2502
    %v2697 = vunpack.c.h.b16 %v2502
    %v2698 = vunpack.c.l.b16 %v2503
    %v2699 = vunpack.c.h.b16 %v2503
    %v2700 = vunpack.c.l.b16 %v2504
    %v2701 = vunpack.c.h.b16 %v2504
    %v2702 = vunpack.c.l.b16 %v2505
    %v2703 = vunpack.c.h.b16 %v2505
    %v2704 = vpack.c.b16 %v2578, %v2576
    %v2705 = vpack.c.b16 %v2579, %v2577
    %v2706 = vpack.c.b16 %v2582, %v2580
    %v2707 = vpack.c.b16 %v2583, %v2581
    %v2708 = vpack.c.b16 %v2586, %v2584
    %v2709 = vpack.c.b16 %v2587, %v2585
    %v2710 = vpack.c.b16 %v2590, %v2588
    %v2711 = vpack.c.b16 %v2591, %v2589
    %v2712 = vpack.c.b16 %v2594, %v2592
    %v2713 = vpack.c.b16 %v2595, %v2593
    %v2714 = vpack.c.b16 %v2598, %v2596
    %v2715 = vpack.c.b16 %v2599, %v2597
    %v2716 = vpack.c.b16 %v2602, %v2600
    %v2717 = vpack.c.b16 %v2603, %v2601
    %v2718 = vpack.c.b16 %v2606, %v2604
    %v2719 = vpack.c.b16 %v2607, %v2605
    %v2720 = vpack.c.b16 %v2610, %v2608
    %v2721 = vpack.c.b16 %v2611, %v2609
    %v2722 = vpack.c.b16 %v2614, %v2612
    %v2723 = vpack.c.b16 %v2615, %v2613
    %v2724 = vpack.c.b16 %v2618, %v2616
    %v2725 = vpack.c.b16 %v2619, %v2617
    %v2726 = vpack.c.b16 %v2622, %v2620
    %v2727 = vpack.c.b16 %v2623, %v2621
    %v2728 = vpack.c.b16 %v2626, %v2624
    %v2729 = vpack.c.b16 %v2627, %v2625
    %v2730 = vpack.c.b16 %v2630, %v2628
    %v2731 = vpack.c.b16 %v2631, %v2629
    %v2732 = vpack.c.b16 %v2634, %v2632
    %v2733 = vpack.c.b16 %v2635, %v2633
    %v2734 = vpack.c.b16 %v2638, %v2636
    %v2735 = vpack.c.b16 %v2639, %v2637
    %v2736 = vpack.c.b16 %v2642, %v2640
    %v2737 = vpack.c.b16 %v2643, %v2641
    %v2738 = vpack.c.b16 %v2646, %v2644
    %v2739 = vpack.c.b16 %v2647, %v2645
    %v2740 = vpack.c.b16 %v2650, %v2648
    %v2741 = vpack.c.b16 %v2651, %v2649
    %v2742 = vpack.c.b16 %v2654, %v2652
    %v2743 = vpack.c.b16 %v2655, %v2653
    %v2744 = vpack.c.b16 %v2658, %v2656
    %v2745 = vpack.c.b16 %v2659, %v2657
    %v2746 = vpack.c.b16 %v2662, %v2660
    %v2747 = vpack.c.b16 %v2663, %v2661
    %v2748 = vpack.c.b16 %v2666, %v2664
    %v2749 = vpack.c.b16 %v2667, %v2665
    %v2750 = vpack.c.b16 %v2670, %v2668
    %v2751 = vpack.c.b16 %v2671, %v2669
    %v2752 = vpack.c.b16 %v2674, %v2672
    %v2753 = vpack.c.b16 %v2675, %v2673
    %v2754 = vpack.c.b16 %v2678, %v2676
    %v2755 = vpack.c.b16 %v2679, %v2677
    %v2756 = vpack.c.b16 %v2682, %v2680
    %v2757 = vpack.c.b16 %v2683, %v2681
    %v2758 = vpack.c.b16 %v2686, %v2684
    %v2759 = vpack.c.b16 %v2687, %v2685
    %v2760 = vpack.c.b16 %v2690, %v2688
    %v2761 = vpack.c.b16 %v2691, %v2689
    %v2762 = vpack.c.b16 %v2694, %v2692
    %v2763 = vpack.c.b16 %v2695, %v2693
    %v2764 = vpack.c.b16 %v2698, %v2696
    %v2765 = vpack.c.b16 %v2699, %v2697
    %v2766 = vpack.c.b16 %v2702, %v2700
    %v2767 = vpack.c.b16 %v2703, %v2701
    %2832 = vmatpush.bf16.msra.mxu0 %v2718
    %2833 = vmatpush.bf16.msra.mxu0 %v2716
    %2834 = vmatpush.bf16.msra.mxu0 %v2714
    %2835 = vmatpush.bf16.msra.mxu0 %v2712
    %2836 = vmatpush.bf16.msra.mxu0 %v2710
    %2837 = vmatpush.bf16.msra.mxu0 %v2708
    %2838 = vmatpush.bf16.msra.mxu0 %v2706
    %2839 = vmatpush.bf16.msra.mxu0 %v2704
    %2840 = vmatmul.bf16.gmra.mxu0 %v2438
    %v2841 = vpop.f32.mrf.mxu0
    %v2842 = vadd.f32 %v2508, %v2841
    %v2843 = vpop.f32.mrf.mxu0
    %2844 = vdwg.mxu0
    %2845 = vmatpush.bf16.msra.mxu0 %v2734
    %2846 = vmatpush.bf16.msra.mxu0 %v2732
    %2847 = vmatpush.bf16.msra.mxu0 %v2730
    %2848 = vmatpush.bf16.msra.mxu0 %v2728
    %2849 = vmatpush.bf16.msra.mxu0 %v2726
    %2850 = vmatpush.bf16.msra.mxu0 %v2724
    %2851 = vmatpush.bf16.msra.mxu0 %v2722
    %2852 = vmatpush.bf16.msra.mxu0 %v2720
    %2853 = vmatmul.bf16.gmra.mxu0 %v2439
    %v2854 = vpop.f32.mrf.mxu0
    %v2855 = vadd.f32 %v2842, %v2854
    %v2856 = vpop.f32.mrf.mxu0
    %2857 = vdwg.mxu0
    %2858 = vmatpush.bf16.msra.mxu0 %v2750
    %2859 = vmatpush.bf16.msra.mxu0 %v2748
    %2860 = vmatpush.bf16.msra.mxu0 %v2746
    %2861 = vmatpush.bf16.msra.mxu0 %v2744
    %2862 = vmatpush.bf16.msra.mxu0 %v2742
    %2863 = vmatpush.bf16.msra.mxu0 %v2740
    %2864 = vmatpush.bf16.msra.mxu0 %v2738
    %2865 = vmatpush.bf16.msra.mxu0 %v2736
    %2866 = vmatmul.bf16.gmra.mxu0 %v2440
    %v2867 = vpop.f32.mrf.mxu0
    %v2868 = vadd.f32 %v2855, %v2867
    %v2869 = vpop.f32.mrf.mxu0
    %2870 = vdwg.mxu0
    %2871 = vmatpush.bf16.msra.mxu0 %v2766
    %2872 = vmatpush.bf16.msra.mxu0 %v2764
    %2873 = vmatpush.bf16.msra.mxu0 %v2762
    %2874 = vmatpush.bf16.msra.mxu0 %v2760
    %2875 = vmatpush.bf16.msra.mxu0 %v2758
    %2876 = vmatpush.bf16.msra.mxu0 %v2756
    %2877 = vmatpush.bf16.msra.mxu0 %v2754
    %2878 = vmatpush.bf16.msra.mxu0 %v2752
    %2879 = vmatmul.bf16.gmra.mxu0 %v2441
    %v2880 = vpop.f32.mrf.mxu0
    %v2881 = vadd.f32 %v2868, %v2880
    %v2882 = vpop.f32.mrf.mxu0
    %2883 = vdwg.mxu0
    %2884 = vmatpush.bf16.msra.mxu0 %v2719
    %2885 = vmatpush.bf16.msra.mxu0 %v2717
    %2886 = vmatpush.bf16.msra.mxu0 %v2715
    %2887 = vmatpush.bf16.msra.mxu0 %v2713
    %2888 = vmatpush.bf16.msra.mxu0 %v2711
    %2889 = vmatpush.bf16.msra.mxu0 %v2709
    %2890 = vmatpush.bf16.msra.mxu0 %v2707
    %2891 = vmatpush.bf16.msra.mxu0 %v2705
    %2892 = vmatmul.bf16.gmra.mxu0 %v2438
    %v2893 = vpop.f32.mrf.mxu0
    %v2894 = vadd.f32 %v2509, %v2893
    %v2895 = vpop.f32.mrf.mxu0
    %2896 = vdwg.mxu0
    %2897 = vmatpush.bf16.msra.mxu0 %v2735
    %2898 = vmatpush.bf16.msra.mxu0 %v2733
    %2899 = vmatpush.bf16.msra.mxu0 %v2731
    %2900 = vmatpush.bf16.msra.mxu0 %v2729
    %2901 = vmatpush.bf16.msra.mxu0 %v2727
    %2902 = vmatpush.bf16.msra.mxu0 %v2725
    %2903 = vmatpush.bf16.msra.mxu0 %v2723
    %2904 = vmatpush.bf16.msra.mxu0 %v2721
    %2905 = vmatmul.bf16.gmra.mxu0 %v2439
    %v2906 = vpop.f32.mrf.mxu0
    %v2907 = vadd.f32 %v2894, %v2906
    %v2908 = vpop.f32.mrf.mxu0
    %2909 = vdwg.mxu0
    %2910 = vmatpush.bf16.msra.mxu0 %v2751
    %2911 = vmatpush.bf16.msra.mxu0 %v2749
    %2912 = vmatpush.bf16.msra.mxu0 %v2747
    %2913 = vmatpush.bf16.msra.mxu0 %v2745
    %2914 = vmatpush.bf16.msra.mxu0 %v2743
    %2915 = vmatpush.bf16.msra.mxu0 %v2741
    %2916 = vmatpush.bf16.msra.mxu0 %v2739
    %2917 = vmatpush.bf16.msra.mxu0 %v2737
    %2918 = vmatmul.bf16.gmra.mxu0 %v2440
    %v2919 = vpop.f32.mrf.mxu0
    %v2920 = vadd.f32 %v2907, %v2919
    %v2921 = vpop.f32.mrf.mxu0
    %2922 = vdwg.mxu0
    %2923 = vmatpush.bf16.msra.mxu0 %v2767
    %2924 = vmatpush.bf16.msra.mxu0 %v2765
    %2925 = vmatpush.bf16.msra.mxu0 %v2763
    %2926 = vmatpush.bf16.msra.mxu0 %v2761
    %2927 = vmatpush.bf16.msra.mxu0 %v2759
    %2928 = vmatpush.bf16.msra.mxu0 %v2757
    %2929 = vmatpush.bf16.msra.mxu0 %v2755
    %2930 = vmatpush.bf16.msra.mxu0 %v2753
    %2931 = vmatmul.bf16.gmra.mxu0 %v2441
    %v2932 = vpop.f32.mrf.mxu0
    %v2933 = vadd.f32 %v2920, %v2932
    %v2934 = vpop.f32.mrf.mxu0
    %2935 = vdwg.mxu0
    %v2936 = vmax.f32 %v2881, 0.0
    %v2937 = vmax.f32 %v2933, 0.0
    %v2938 = vpack.c.bf16 %v2936, %v2936
    %v2939 = vpack.c.bf16 %v2937, %v2937
    %v2940 = vld [vmem:[#allocation12] sm:$0xf]
    %v2941 = vld [vmem:[#allocation12 + $0x4] sm:$0xf]
    %v2942 = vld [vmem:[#allocation12 + $0x8] sm:$0xf]
    %v2943 = vld [vmem:[#allocation12 + $0xc] sm:$0xf]
    %v2944 = vld [vmem:[#allocation12 + $0x10] sm:$0xf]
    %v2945 = vld [vmem:[#allocation12 + $0x14] sm:$0xf]
    %v2946 = vld [vmem:[#allocation12 + $0x18] sm:$0xf]
    %v2947 = vld [vmem:[#allocation12 + $0x1c] sm:$0xf]
    %v2948 = vld [vmem:[#allocation12 + $0x20] sm:$0xf]
    %v2949 = vld [vmem:[#allocation12 + $0x24] sm:$0xf]
    %v2950 = vld [vmem:[#allocation12 + $0x28] sm:$0xf]
    %v2951 = vld [vmem:[#allocation12 + $0x2c] sm:$0xf]
    %v2952 = vld [vmem:[#allocation12 + $0x30] sm:$0xf]
    %v2953 = vld [vmem:[#allocation12 + $0x34] sm:$0xf]
    %v2954 = vld [vmem:[#allocation12 + $0x38] sm:$0xf]
    %v2955 = vld [vmem:[#allocation12 + $0x3c] sm:$0xf]
    %v2956 = vld [vmem:[#allocation12 + $0x40] sm:$0xf]
    %v2957 = vld [vmem:[#allocation12 + $0x44] sm:$0xf]
    %v2958 = vld [vmem:[#allocation12 + $0x48] sm:$0xf]
    %v2959 = vld [vmem:[#allocation12 + $0x4c] sm:$0xf]
    %v2960 = vld [vmem:[#allocation12 + $0x50] sm:$0xf]
    %v2961 = vld [vmem:[#allocation12 + $0x54] sm:$0xf]
    %v2962 = vld [vmem:[#allocation12 + $0x58] sm:$0xf]
    %v2963 = vld [vmem:[#allocation12 + $0x5c] sm:$0xf]
    %v2964 = vld [vmem:[#allocation12 + $0x60] sm:$0xf]
    %v2965 = vld [vmem:[#allocation12 + $0x64] sm:$0xf]
    %v2966 = vld [vmem:[#allocation12 + $0x68] sm:$0xf]
    %v2967 = vld [vmem:[#allocation12 + $0x6c] sm:$0xf]
    %v2968 = vld [vmem:[#allocation12 + $0x70] sm:$0xf]
    %v2969 = vld [vmem:[#allocation12 + $0x74] sm:$0xf]
    %v2970 = vld [vmem:[#allocation12 + $0x78] sm:$0xf]
    %v2971 = vld [vmem:[#allocation12 + $0x7c] sm:$0xf]
    %v2972 = vld [vmem:[%s8] sm:$0x1]
    %v2974 = vperm.slane %v2972, 0
    %v3008 = vunpack.c.l.b16 %v2940
    %v3009 = vunpack.c.l.b16 %v2941
    %v3010 = vunpack.c.l.b16 %v2942
    %v3011 = vunpack.c.l.b16 %v2943
    %v3012 = vunpack.c.l.b16 %v2944
    %v3013 = vunpack.c.l.b16 %v2945
    %v3014 = vunpack.c.l.b16 %v2946
    %v3015 = vunpack.c.l.b16 %v2947
    %v3016 = vunpack.c.l.b16 %v2948
    %v3017 = vunpack.c.l.b16 %v2949
    %v3018 = vunpack.c.l.b16 %v2950
    %v3019 = vunpack.c.l.b16 %v2951
    %v3020 = vunpack.c.l.b16 %v2952
    %v3021 = vunpack.c.l.b16 %v2953
    %v3022 = vunpack.c.l.b16 %v2954
    %v3023 = vunpack.c.l.b16 %v2955
    %v3024 = vunpack.c.l.b16 %v2956
    %v3025 = vunpack.c.l.b16 %v2957
    %v3026 = vunpack.c.l.b16 %v2958
    %v3027 = vunpack.c.l.b16 %v2959
    %v3028 = vunpack.c.l.b16 %v2960
    %v3029 = vunpack.c.l.b16 %v2961
    %v3030 = vunpack.c.l.b16 %v2962
    %v3031 = vunpack.c.l.b16 %v2963
    %v3032 = vunpack.c.l.b16 %v2964
    %v3033 = vunpack.c.l.b16 %v2965
    %v3034 = vunpack.c.l.b16 %v2966
    %v3035 = vunpack.c.l.b16 %v2967
    %v3036 = vunpack.c.l.b16 %v2968
    %v3037 = vunpack.c.l.b16 %v2969
    %v3038 = vunpack.c.l.b16 %v2970
    %v3039 = vunpack.c.l.b16 %v2971
    %v3040 = vpack.c.b16 %v3009, %v3008
    %v3041 = vpack.c.b16 %v3011, %v3010
    %v3042 = vpack.c.b16 %v3013, %v3012
    %v3043 = vpack.c.b16 %v3015, %v3014
    %v3044 = vpack.c.b16 %v3017, %v3016
    %v3045 = vpack.c.b16 %v3019, %v3018
    %v3046 = vpack.c.b16 %v3021, %v3020
    %v3047 = vpack.c.b16 %v3023, %v3022
    %v3048 = vpack.c.b16 %v3025, %v3024
    %v3049 = vpack.c.b16 %v3027, %v3026
    %v3050 = vpack.c.b16 %v3029, %v3028
    %v3051 = vpack.c.b16 %v3031, %v3030
    %v3052 = vpack.c.b16 %v3033, %v3032
    %v3053 = vpack.c.b16 %v3035, %v3034
    %v3054 = vpack.c.b16 %v3037, %v3036
    %v3055 = vpack.c.b16 %v3039, %v3038
    %3072 = vmatpush.bf16.msra.mxu0 %v3047
    %3073 = vmatpush.bf16.msra.mxu0 %v3046
    %3074 = vmatpush.bf16.msra.mxu0 %v3045
    %3075 = vmatpush.bf16.msra.mxu0 %v3044
    %3076 = vmatpush.bf16.msra.mxu0 %v3043
    %3077 = vmatpush.bf16.msra.mxu0 %v3042
    %3078 = vmatpush.bf16.msra.mxu0 %v3041
    %3079 = vmatpush.bf16.msra.mxu0 %v3040
    %3080 = vmatmul.bf16.gmra.mxu0 %v2938
    %v3081 = vpop.f32.mrf.mxu0
    %v3082 = vadd.f32 %v2974, %v3081
    %v3083 = vpop.f32.mrf.mxu0
    %3084 = vdwg.mxu0
    %3085 = vmatpush.bf16.msra.mxu0 %v3055
    %3086 = vmatpush.bf16.msra.mxu0 %v3054
    %3087 = vmatpush.bf16.msra.mxu0 %v3053
    %3088 = vmatpush.bf16.msra.mxu0 %v3052
    %3089 = vmatpush.bf16.msra.mxu0 %v3051
    %3090 = vmatpush.bf16.msra.mxu0 %v3050
    %3091 = vmatpush.bf16.msra.mxu0 %v3049
    %3092 = vmatpush.bf16.msra.mxu0 %v3048
    %3093 = vmatmul.bf16.gmra.mxu0 %v2939
    %v3094 = vpop.f32.mrf.mxu0
    %v3095 = vadd.f32 %v3082, %v3094
    %v3096 = vpop.f32.mrf.mxu0
    %3097 = vdwg.mxu0
    %vm3098 = vcmask 15360
    %3099 = vst.msk [vmem:[%s9] sm:$0xff] %vm3098, %v3095
    // Predicated region
    $region66: #{tpu_custom_call.1} parent=1 // pred_check
      _
    $region67: #{tpu_custom_call.1} parent=1 // pred_check_branch
      %3101 = sbr.rel (0) target = $region69
    $region68: #{tpu_custom_call.1} parent=1 // pred_region
      _
    $region69: #{tpu_custom_call.1} parent=1 // pred_fallthru
      _
    // Predicated region
    $region70: #{tpu_custom_call.1} parent=1 // pred_check
      _
    $region71: #{tpu_custom_call.1} parent=1 // pred_check_branch
      %3103 = sbr.rel (0) target = $region73
    $region72: #{tpu_custom_call.1} parent=1 // pred_region
      _
    $region73: #{tpu_custom_call.1} parent=1 // pred_fallthru
      _
    %3104 = vsyncpa [#allocation3], 1
    %3105 = vsyncpa [#allocation5], 1
    %3106 = vsyncpa [#allocation8], 1
    %3107 = vsyncpa [#allocation11], 1

</llo_original>
